<compile_context>
chip_gen: v5e
topology: v5e:2x2
jax: 0.10.0
libtpu: 0.0.40
codegen_flags: <defaults>
</compile_context>

<pallas_src>
import functools

import jax
import jax.numpy as jnp
from jax import lax
from jax.experimental import pallas as pl
from jax.experimental.pallas import tpu as pltpu


# ------------------------------------------------------------------ helpers

def _gelu(x):
    # exact GELU (PyTorch nn.GELU default, approximate='none').
    # NOTE(perf): a tanh-approx GELU would move work VPU->EUP but changes
    # numerics vs torch; kept exact to preserve module semantics.
    return 0.5 * x * (1.0 + lax.erf(x * jnp.float32(0.7071067811865476)))


def _layernorm_onepass(x, gamma, beta, eps=1e-5):
    # single pass: sum and sum-of-squares, then one fused normalize/scale/shift
    n = jnp.float32(x.shape[-1])
    s1 = jnp.sum(x, axis=-1, keepdims=True)
    s2 = jnp.sum(x * x, axis=-1, keepdims=True)
    mu = s1 / n
    var = s2 / n - mu * mu
    return (x - mu) * lax.rsqrt(var + eps) * gamma + beta


def _layernorm_ref(x, gamma, beta, eps=1e-5):
    mu = jnp.mean(x, axis=-1, keepdims=True)
    var = jnp.mean((x - mu) ** 2, axis=-1, keepdims=True)
    return (x - mu) * lax.rsqrt(var + eps) * gamma + beta


# ------------------------------------------------------------------ fused kernel

def _make_fused_kernel(B, S, mm_dtype):
    """Returns the fused FireSVD kernel closed over static B, S and matmul dtype."""

    def _mm(a, b):
        return jnp.dot(a.astype(mm_dtype), b.astype(mm_dtype),
                       preferred_element_type=jnp.float32)

    def kernel(x_ref, we_ref, be_ref,
               tn_g_ref, tn_b_ref, wt_ref, bt_ref,
               fn_g_ref, fn_b_ref, wf_ref, bf_ref,
               pool_ref, wc_ref, bc_ref,
               out_ref, acc_ref):
        l = pl.program_id(0)
        L = pl.num_programs(0)

        # ---- bottleneck: run once, result lives in VMEM scratch ------------
        @pl.when(l == 0)
        def _():
            acc_ref[...] = _mm(x_ref[...], we_ref[...]) + be_ref[...]

        # ---- current layer params (leading block dim of size 1) ------------
        tn_g = tn_g_ref[0]       # [1, H]
        tn_b = tn_b_ref[0]       # [1, H]
        wt = wt_ref[0]           # [S, S]   (y = Wt @ x along tokens)
        bt = bt_ref[0]           # [S, H]   (pre-broadcast in wrapper)
        fn_g = fn_g_ref[0]       # [1, H]
        fn_b = fn_b_ref[0]       # [1, H]
        wf = wf_ref[0]           # [H, H]   pre-transposed: [in, out]
        bf = bf_ref[0]           # [1, H]

        # ---- token branch: per-batch block (mixing acts within one batch) ---
        # Read each [S, H] block straight from the resident scratch; layernorm,
        # mix, activate and write back in place.  Static unroll over B.
        for b in range(B):
            hb = acc_ref[pl.ds(b * S, S), :]
            xb = _layernorm_onepass(hb, tn_g, tn_b)
            tok = _mm(wt, xb) + bt
            acc_ref[pl.ds(b * S, S), :] = _gelu(tok + hb)

        # ---- feature branch: whole flattened activation in one MXU matmul ---
        # TODO(synk): DropPath (stochastic depth) is identity at inference; not modeled.
        h = acc_ref[...]         # [B*S, H]
        xn = _layernorm_onepass(h, fn_g, fn_b)
        h = _gelu(_mm(xn, wf) + bf + h)
        acc_ref[...] = h

        # ---- classifier: mean-pool folded into an MXU matmul, run once ------
        @pl.when(l == L - 1)
        def _():
            pooled = _mm(pool_ref[...], h)               # [B, H]
            out_ref[...] = _mm(pooled, wc_ref[...]) + bc_ref[...]

    return kernel


# ------------------------------------------------------------------ wrapper

@functools.partial(jax.jit, static_argnames=("use_bf16",))
def fire_svd_forward(x, params, *, use_bf16=False):
    B, S, E = x.shape
    H = params["we"].shape[1]
    C = params["wc"].shape[1]
    L = params["wt"].shape[0]

    x_flat = x.reshape(B * S, E)                         # batch-major flatten
    # pooling matrix: pooled = pool @ h_flat, pool[b, b*S + s] = 1/S
    pool = jnp.repeat(jnp.eye(B, dtype=jnp.float32) / S, S, axis=1)  # [B, B*S]
    # token-mixer bias: broadcast [L, S, 1] -> [L, S, H] once (lane-aligned add)
    bt_full = jnp.broadcast_to(params["bt"], (L, S, H))

    mm_dtype = jnp.bfloat16 if use_bf16 else jnp.float32
    kernel = _make_fused_kernel(B, S, mm_dtype)

    grid_spec = pltpu.PrefetchScalarGridSpec(
        num_scalar_prefetch=0,
        grid=(L,),
        in_specs=[
            # constant-index blocks: DMA'd once, reused across all layer steps
            pl.BlockSpec((B * S, E), lambda l: (0, 0)),       # x (flattened)
            pl.BlockSpec((E, H), lambda l: (0, 0)),           # bottleneck W [in,out]
            pl.BlockSpec((1, H), lambda l: (0, 0)),           # bottleneck b
            # per-layer stacked params: streamed (double-buffered) by layer index
            pl.BlockSpec((1, 1, H), lambda l: (l, 0, 0)),     # token_norm gamma
            pl.BlockSpec((1, 1, H), lambda l: (l, 0, 0)),     # token_norm beta
            pl.BlockSpec((1, S, S), lambda l: (l, 0, 0)),     # token mixer W
            pl.BlockSpec((1, S, H), lambda l: (l, 0, 0)),     # token mixer b (broadcast)
            pl.BlockSpec((1, 1, H), lambda l: (l, 0, 0)),     # feature_norm gamma
            pl.BlockSpec((1, 1, H), lambda l: (l, 0, 0)),     # feature_norm beta
            pl.BlockSpec((1, H, H), lambda l: (l, 0, 0)),     # feature mixer W [in,out]
            pl.BlockSpec((1, 1, H), lambda l: (l, 0, 0)),     # feature mixer b
            # classifier (constant index)
            pl.BlockSpec((B, B * S), lambda l: (0, 0)),       # pooling matrix
            pl.BlockSpec((H, C), lambda l: (0, 0)),           # classifier W [in,out]
            pl.BlockSpec((1, C), lambda l: (0, 0)),           # classifier b
        ],
        out_specs=pl.BlockSpec((B, C), lambda l: (0, 0)),
        scratch_shapes=[pltpu.VMEM((B * S, H), jnp.float32)],  # resident activation
    )

    return pl.pallas_call(
        kernel,
        out_shape=jax.ShapeDtypeStruct((B, C), jnp.float32),
        grid_spec=grid_spec,
        compiler_params=pltpu.CompilerParams(
            dimension_semantics=("arbitrary",),          # layer loop is sequential
        ),
    )(x_flat, params["we"], params["be"],
      params["tn_g"], params["tn_b"], params["wt"], bt_full,
      params["fn_g"], params["fn_b"], params["wf_t"], params["bf"],
      pool, params["wc"], params["bc"])


# ------------------------------------------------------------------ params

def init_params(key, *, embed, seq, hidden, num_classes, num_layers):
    """Builds stacked, pre-transposed parameters.

    nn.Linear weights ([out, in] in torch) are transposed ONCE here to
    [in, out] so the kernel never transposes on the MXU path."""
    def rnd(i, shape, scale=0.02):
        return scale * jax.random.normal(jax.random.fold_in(key, i), shape, jnp.float32)

    L = num_layers
    we_torch = rnd(0, (hidden, embed))                    # [out, in]
    wc_torch = rnd(1, (num_classes, hidden))              # [out, in]
    wt = jnp.stack([rnd(10 + i, (seq, seq)) for i in range(L)])        # [L, S, S]
    wf_torch = jnp.stack([rnd(100 + i, (hidden, hidden)) for i in range(L)])

    params = {
        "we": we_torch.T,                                               # [E, H]
        "be": rnd(2, (1, hidden)),
        "tn_g": 1.0 + rnd(3, (L, 1, hidden)),
        "tn_b": rnd(4, (L, 1, hidden)),
        "wt": wt,                                                       # [L, S, S]
        "bt": rnd(5, (L, seq, 1)),
        "fn_g": 1.0 + rnd(6, (L, 1, hidden)),
        "fn_b": rnd(7, (L, 1, hidden)),
        "wf_t": jnp.transpose(wf_torch, (0, 2, 1)),                     # [L, H_in, H_out]
        "bf": rnd(8, (L, 1, hidden)),
        "wc": wc_torch.T,                                               # [H, C]
        "bc": rnd(9, (1, num_classes)),
    }
    return params


# ------------------------------------------------------------------ reference

def fire_svd_reference(x, p):
    """Pure-JAX reference (two-pass LayerNorm, exact GELU)."""
    h = x @ p["we"] + p["be"]                             # [B, S, H]
    L = p["wt"].shape[0]
    for l in range(L):
        res = h
        hn = _layernorm_ref(h, p["tn_g"][l, 0], p["tn_b"][l, 0])
        tok = jnp.einsum("ts,bsh->bth", p["wt"][l], hn) + p["bt"][l][None]
        h = _gelu(tok + res)
        res = h
        hn = _layernorm_ref(h, p["fn_g"][l, 0], p["fn_b"][l, 0])
        feat = hn @ p["wf_t"][l] + p["bf"][l]
        h = _gelu(feat + res)
    pooled = jnp.mean(h, axis=1)
    return pooled @ p["wc"] + p["bc"]


# ------------------------------------------------------------------ main

if __name__ == "__main__":
    # small but lane-dense shapes: H = 128 (full vreg lanes), S = 8 (sublane mult)
    B, S, E, H, C = 2, 8, 16, 128, 10
    NUM_LAYERS = 3   # two FireMixers with depths (2, 1) -> 3 FireMixerLayers total

    key = jax.random.PRNGKey(0)
    k_x, k_p = jax.random.split(key)
    x = jax.random.normal(k_x, (B, S, E), jnp.float32)
    params = init_params(k_p, embed=E, seq=S, hidden=H,
                         num_classes=C, num_layers=NUM_LAYERS)

    out = fire_svd_forward(x, params)          # f32 matmuls: matches torch numerics
    out = jax.block_until_ready(out)

    ref = fire_svd_reference(x, params)
    assert out.shape == (B, C), out.shape
    assert jnp.allclose(out, ref, rtol=2e-3, atol=2e-3), \
        f"max err {float(jnp.max(jnp.abs(out - ref)))}"

    print("KERNEL_OK")
</pallas_src>

<mosaic_0001>
module attributes {stable_mosaic.version = 11 : i64} {
  func.func @kernel(%arg0: i32, %arg1: memref<16x16xf32, #tpu.memory_space<vmem>>, %arg2: memref<16x128xf32, #tpu.memory_space<vmem>>, %arg3: memref<1x128xf32, #tpu.memory_space<vmem>>, %arg4: memref<1x1x128xf32, #tpu.memory_space<vmem>>, %arg5: memref<1x1x128xf32, #tpu.memory_space<vmem>>, %arg6: memref<1x8x8xf32, #tpu.memory_space<vmem>>, %arg7: memref<1x8x128xf32, #tpu.memory_space<vmem>>, %arg8: memref<1x1x128xf32, #tpu.memory_space<vmem>>, %arg9: memref<1x1x128xf32, #tpu.memory_space<vmem>>, %arg10: memref<1x128x128xf32, #tpu.memory_space<vmem>>, %arg11: memref<1x1x128xf32, #tpu.memory_space<vmem>>, %arg12: memref<2x16xf32, #tpu.memory_space<vmem>>, %arg13: memref<128x10xf32, #tpu.memory_space<vmem>>, %arg14: memref<1x10xf32, #tpu.memory_space<vmem>>, %arg15: memref<2x10xf32, #tpu.memory_space<vmem>>, %arg16: memref<16x128xf32, #tpu.memory_space<vmem>>) attributes {dimension_semantics = [#tpu.dimension_semantics<arbitrary>], iteration_bounds = array<i64: 3>, scalar_prefetch = 0 : i64, scratch_operands = 1 : i64, tpu.core_type = #tpu.core_type<tc>, window_params = [{pipeline_mode = #tpu.pipeline_mode<synchronous>, transform_indices = @transform_0, window_bounds = array<i64: 16, 16>}, {pipeline_mode = #tpu.pipeline_mode<synchronous>, transform_indices = @transform_1, window_bounds = array<i64: 16, 128>}, {pipeline_mode = #tpu.pipeline_mode<synchronous>, transform_indices = @transform_2, window_bounds = array<i64: 1, 128>}, {transform_indices = @transform_3, window_bounds = array<i64: 1, 1, 128>}, {transform_indices = @transform_4, window_bounds = array<i64: 1, 1, 128>}, {transform_indices = @transform_5, window_bounds = array<i64: 1, 8, 8>}, {transform_indices = @transform_6, window_bounds = array<i64: 1, 8, 128>}, {transform_indices = @transform_7, window_bounds = array<i64: 1, 1, 128>}, {transform_indices = @transform_8, window_bounds = array<i64: 1, 1, 128>}, {transform_indices = @transform_9, window_bounds = array<i64: 1, 128, 128>}, {transform_indices = @transform_10, window_bounds = array<i64: 1, 1, 128>}, {pipeline_mode = #tpu.pipeline_mode<synchronous>, transform_indices = @transform_11, window_bounds = array<i64: 2, 16>}, {pipeline_mode = #tpu.pipeline_mode<synchronous>, transform_indices = @transform_12, window_bounds = array<i64: 128, 10>}, {pipeline_mode = #tpu.pipeline_mode<synchronous>, transform_indices = @transform_13, window_bounds = array<i64: 1, 10>}, {pipeline_mode = #tpu.pipeline_mode<synchronous>, transform_indices = @transform_14, window_bounds = array<i64: 2, 10>}]} {
    %c0_i32 = arith.constant 0 : i32
    %0 = arith.cmpi eq, %arg0, %c0_i32 : i32
    %1 = arith.extui %0 : i1 to i32
    %c0_i32_0 = arith.constant 0 : i32
    %2 = arith.cmpi ne, %1, %c0_i32_0 : i32
    scf.if %2 {
      %c0_62 = arith.constant 0 : index
      %c0_63 = arith.constant 0 : index
      %128 = vector.load %arg1[%c0_62, %c0_63] : memref<16x16xf32, #tpu.memory_space<vmem>>, vector<16x16xf32>
      %c0_64 = arith.constant 0 : index
      %c0_65 = arith.constant 0 : index
      %129 = vector.load %arg2[%c0_64, %c0_65] : memref<16x128xf32, #tpu.memory_space<vmem>>, vector<16x128xf32>
      %cst_66 = arith.constant dense<0.000000e+00> : vector<16x128xf32>
      %130 = tpu.matmul %128, %129, %cst_66 {dimension_numbers = #tpu.dot_dimension_numbers<[1], [0], [0], [1], [0, 0, 1, 1], [], []>} : vector<16x16xf32>, vector<16x128xf32>, vector<16x128xf32> -> vector<16x128xf32>
      %c0_67 = arith.constant 0 : index
      %c0_68 = arith.constant 0 : index
      %131 = vector.load %arg3[%c0_67, %c0_68] : memref<1x128xf32, #tpu.memory_space<vmem>>, vector<1x128xf32>
      %132 = vector.broadcast %131 : vector<1x128xf32> to vector<16x128xf32>
      %133 = arith.addf %130, %132 : vector<16x128xf32>
      %c0_69 = arith.constant 0 : index
      %c0_70 = arith.constant 0 : index
      %134 = vector.load %arg16[%c0_69, %c0_70] : memref<16x128xf32, #tpu.memory_space<vmem>>, vector<16x128xf32>
      tpu.vector_store %arg16[%c0_69, %c0_70], %133 {strides = array<i32>} : memref<16x128xf32, #tpu.memory_space<vmem>>, vector<16x128xf32>,
    } else {
    }
    %c0 = arith.constant 0 : index
    %c0_1 = arith.constant 0 : index
    %c0_2 = arith.constant 0 : index
    %3 = vector.load %arg4[%c0, %c0_1, %c0_2] : memref<1x1x128xf32, #tpu.memory_space<vmem>>, vector<1x1x128xf32>
    %4 = vector.shape_cast %3 : vector<1x1x128xf32> to vector<1x128xf32>
    %c0_3 = arith.constant 0 : index
    %c0_4 = arith.constant 0 : index
    %c0_5 = arith.constant 0 : index
    %5 = vector.load %arg5[%c0_3, %c0_4, %c0_5] : memref<1x1x128xf32, #tpu.memory_space<vmem>>, vector<1x1x128xf32>
    %6 = vector.shape_cast %5 : vector<1x1x128xf32> to vector<1x128xf32>
    %c0_6 = arith.constant 0 : index
    %c0_7 = arith.constant 0 : index
    %c0_8 = arith.constant 0 : index
    %7 = vector.load %arg6[%c0_6, %c0_7, %c0_8] : memref<1x8x8xf32, #tpu.memory_space<vmem>>, vector<1x8x8xf32>
    %8 = vector.shape_cast %7 : vector<1x8x8xf32> to vector<8x8xf32>
    %c0_9 = arith.constant 0 : index
    %c0_10 = arith.constant 0 : index
    %c0_11 = arith.constant 0 : index
    %9 = vector.load %arg7[%c0_9, %c0_10, %c0_11] : memref<1x8x128xf32, #tpu.memory_space<vmem>>, vector<1x8x128xf32>
    %10 = vector.shape_cast %9 : vector<1x8x128xf32> to vector<8x128xf32>
    %c0_12 = arith.constant 0 : index
    %c0_13 = arith.constant 0 : index
    %c0_14 = arith.constant 0 : index
    %11 = vector.load %arg8[%c0_12, %c0_13, %c0_14] : memref<1x1x128xf32, #tpu.memory_space<vmem>>, vector<1x1x128xf32>
    %12 = vector.shape_cast %11 : vector<1x1x128xf32> to vector<1x128xf32>
    %c0_15 = arith.constant 0 : index
    %c0_16 = arith.constant 0 : index
    %c0_17 = arith.constant 0 : index
    %13 = vector.load %arg9[%c0_15, %c0_16, %c0_17] : memref<1x1x128xf32, #tpu.memory_space<vmem>>, vector<1x1x128xf32>
    %14 = vector.shape_cast %13 : vector<1x1x128xf32> to vector<1x128xf32>
    %c0_18 = arith.constant 0 : index
    %c0_19 = arith.constant 0 : index
    %c0_20 = arith.constant 0 : index
    %15 = vector.load %arg10[%c0_18, %c0_19, %c0_20] : memref<1x128x128xf32, #tpu.memory_space<vmem>>, vector<1x128x128xf32>
    %16 = vector.shape_cast %15 : vector<1x128x128xf32> to vector<128x128xf32>
    %c0_21 = arith.constant 0 : index
    %c0_22 = arith.constant 0 : index
    %c0_23 = arith.constant 0 : index
    %17 = vector.load %arg11[%c0_21, %c0_22, %c0_23] : memref<1x1x128xf32, #tpu.memory_space<vmem>>, vector<1x1x128xf32>
    %18 = vector.shape_cast %17 : vector<1x1x128xf32> to vector<1x128xf32>
    %c0_24 = arith.constant 0 : index
    %c0_25 = arith.constant 0 : index
    %19 = vector.load %arg16[%c0_24, %c0_25] : memref<16x128xf32, #tpu.memory_space<vmem>>, vector<8x128xf32>
    %cst = arith.constant dense<0.000000e+00> : vector<8xf32>
    %20 = vector.multi_reduction <add>, %19, %cst [1] : vector<8x128xf32> to vector<8xf32>
    %21 = vector.shape_cast %20 : vector<8xf32> to vector<8x1xf32>
    %22 = arith.mulf %19, %19 : vector<8x128xf32>
    %cst_26 = arith.constant dense<0.000000e+00> : vector<8xf32>
    %23 = vector.multi_reduction <add>, %22, %cst_26 [1] : vector<8x128xf32> to vector<8xf32>
    %24 = vector.shape_cast %23 : vector<8xf32> to vector<8x1xf32>
    %cst_27 = arith.constant 1.280000e+02 : f32
    %25 = vector.broadcast %cst_27 : f32 to vector<8x1xf32>
    %26 = arith.divf %21, %25 : vector<8x1xf32>
    %cst_28 = arith.constant 1.280000e+02 : f32
    %27 = vector.broadcast %cst_28 : f32 to vector<8x1xf32>
    %28 = arith.divf %24, %27 : vector<8x1xf32>
    %29 = arith.mulf %26, %26 : vector<8x1xf32>
    %30 = arith.subf %28, %29 : vector<8x1xf32>
    %31 = vector.broadcast %26 : vector<8x1xf32> to vector<8x128xf32>
    %32 = arith.subf %19, %31 : vector<8x128xf32>
    %cst_29 = arith.constant 9.99999974E-6 : f32
    %33 = vector.broadcast %cst_29 : f32 to vector<8x1xf32>
    %34 = arith.addf %30, %33 : vector<8x1xf32>
    %35 = math.rsqrt %34 : vector<8x1xf32>
    %36 = vector.broadcast %35 : vector<8x1xf32> to vector<8x128xf32>
    %37 = arith.mulf %32, %36 : vector<8x128xf32>
    %38 = vector.broadcast %4 : vector<1x128xf32> to vector<8x128xf32>
    %39 = arith.mulf %37, %38 : vector<8x128xf32>
    %40 = vector.broadcast %6 : vector<1x128xf32> to vector<8x128xf32>
    %41 = arith.addf %39, %40 : vector<8x128xf32>
    %cst_30 = arith.constant dense<0.000000e+00> : vector<8x128xf32>
    %42 = tpu.matmul %8, %41, %cst_30 {dimension_numbers = #tpu.dot_dimension_numbers<[1], [0], [0], [1], [0, 0, 1, 1], [], []>} : vector<8x8xf32>, vector<8x128xf32>, vector<8x128xf32> -> vector<8x128xf32>
    %43 = arith.addf %42, %10 : vector<8x128xf32>
    %44 = arith.addf %43, %19 : vector<8x128xf32>
    %cst_31 = arith.constant 5.000000e-01 : f32
    %45 = vector.broadcast %cst_31 : f32 to vector<8x128xf32>
    %46 = arith.mulf %45, %44 : vector<8x128xf32>
    %cst_32 = arith.constant 0.707106769 : f32
    %47 = vector.broadcast %cst_32 : f32 to vector<8x128xf32>
    %48 = arith.mulf %44, %47 : vector<8x128xf32>
    %49 = math.erf %48 : vector<8x128xf32>
    %cst_33 = arith.constant 1.000000e+00 : f32
    %50 = vector.broadcast %cst_33 : f32 to vector<8x128xf32>
    %51 = arith.addf %50, %49 : vector<8x128xf32>
    %52 = arith.mulf %46, %51 : vector<8x128xf32>
    %c0_34 = arith.constant 0 : index
    %c0_35 = arith.constant 0 : index
    %53 = vector.load %arg16[%c0_34, %c0_35] : memref<16x128xf32, #tpu.memory_space<vmem>>, vector<8x128xf32>
    tpu.vector_store %arg16[%c0_34, %c0_35], %52 {strides = array<i32>} : memref<16x128xf32, #tpu.memory_space<vmem>>, vector<8x128xf32>,
    %c8 = arith.constant 8 : index
    %c0_36 = arith.constant 0 : index
    %54 = vector.load %arg16[%c8, %c0_36] : memref<16x128xf32, #tpu.memory_space<vmem>>, vector<8x128xf32>
    %cst_37 = arith.constant dense<0.000000e+00> : vector<8xf32>
    %55 = vector.multi_reduction <add>, %54, %cst_37 [1] : vector<8x128xf32> to vector<8xf32>
    %56 = vector.shape_cast %55 : vector<8xf32> to vector<8x1xf32>
    %57 = arith.mulf %54, %54 : vector<8x128xf32>
    %cst_38 = arith.constant dense<0.000000e+00> : vector<8xf32>
    %58 = vector.multi_reduction <add>, %57, %cst_38 [1] : vector<8x128xf32> to vector<8xf32>
    %59 = vector.shape_cast %58 : vector<8xf32> to vector<8x1xf32>
    %cst_39 = arith.constant 1.280000e+02 : f32
    %60 = vector.broadcast %cst_39 : f32 to vector<8x1xf32>
    %61 = arith.divf %56, %60 : vector<8x1xf32>
    %cst_40 = arith.constant 1.280000e+02 : f32
    %62 = vector.broadcast %cst_40 : f32 to vector<8x1xf32>
    %63 = arith.divf %59, %62 : vector<8x1xf32>
    %64 = arith.mulf %61, %61 : vector<8x1xf32>
    %65 = arith.subf %63, %64 : vector<8x1xf32>
    %66 = vector.broadcast %61 : vector<8x1xf32> to vector<8x128xf32>
    %67 = arith.subf %54, %66 : vector<8x128xf32>
    %cst_41 = arith.constant 9.99999974E-6 : f32
    %68 = vector.broadcast %cst_41 : f32 to vector<8x1xf32>
    %69 = arith.addf %65, %68 : vector<8x1xf32>
    %70 = math.rsqrt %69 : vector<8x1xf32>
    %71 = vector.broadcast %70 : vector<8x1xf32> to vector<8x128xf32>
    %72 = arith.mulf %67, %71 : vector<8x128xf32>
    %73 = vector.broadcast %4 : vector<1x128xf32> to vector<8x128xf32>
    %74 = arith.mulf %72, %73 : vector<8x128xf32>
    %75 = vector.broadcast %6 : vector<1x128xf32> to vector<8x128xf32>
    %76 = arith.addf %74, %75 : vector<8x128xf32>
    %cst_42 = arith.constant dense<0.000000e+00> : vector<8x128xf32>
    %77 = tpu.matmul %8, %76, %cst_42 {dimension_numbers = #tpu.dot_dimension_numbers<[1], [0], [0], [1], [0, 0, 1, 1], [], []>} : vector<8x8xf32>, vector<8x128xf32>, vector<8x128xf32> -> vector<8x128xf32>
    %78 = arith.addf %77, %10 : vector<8x128xf32>
    %79 = arith.addf %78, %54 : vector<8x128xf32>
    %cst_43 = arith.constant 5.000000e-01 : f32
    %80 = vector.broadcast %cst_43 : f32 to vector<8x128xf32>
    %81 = arith.mulf %80, %79 : vector<8x128xf32>
    %cst_44 = arith.constant 0.707106769 : f32
    %82 = vector.broadcast %cst_44 : f32 to vector<8x128xf32>
    %83 = arith.mulf %79, %82 : vector<8x128xf32>
    %84 = math.erf %83 : vector<8x128xf32>
    %cst_45 = arith.constant 1.000000e+00 : f32
    %85 = vector.broadcast %cst_45 : f32 to vector<8x128xf32>
    %86 = arith.addf %85, %84 : vector<8x128xf32>
    %87 = arith.mulf %81, %86 : vector<8x128xf32>
    %c8_46 = arith.constant 8 : index
    %c0_47 = arith.constant 0 : index
    %88 = vector.load %arg16[%c8_46, %c0_47] : memref<16x128xf32, #tpu.memory_space<vmem>>, vector<8x128xf32>
    tpu.vector_store %arg16[%c8_46, %c0_47], %87 {strides = array<i32>} : memref<16x128xf32, #tpu.memory_space<vmem>>, vector<8x128xf32>,
    %c0_48 = arith.constant 0 : index
    %c0_49 = arith.constant 0 : index
    %89 = vector.load %arg16[%c0_48, %c0_49] : memref<16x128xf32, #tpu.memory_space<vmem>>, vector<16x128xf32>
    %cst_50 = arith.constant dense<0.000000e+00> : vector<16xf32>
    %90 = vector.multi_reduction <add>, %89, %cst_50 [1] : vector<16x128xf32> to vector<16xf32>
    %91 = vector.shape_cast %90 : vector<16xf32> to vector<16x1xf32>
    %92 = arith.mulf %89, %89 : vector<16x128xf32>
    %cst_51 = arith.constant dense<0.000000e+00> : vector<16xf32>
    %93 = vector.multi_reduction <add>, %92, %cst_51 [1] : vector<16x128xf32> to vector<16xf32>
    %94 = vector.shape_cast %93 : vector<16xf32> to vector<16x1xf32>
    %cst_52 = arith.constant 1.280000e+02 : f32
    %95 = vector.broadcast %cst_52 : f32 to vector<16x1xf32>
    %96 = arith.divf %91, %95 : vector<16x1xf32>
    %cst_53 = arith.constant 1.280000e+02 : f32
    %97 = vector.broadcast %cst_53 : f32 to vector<16x1xf32>
    %98 = arith.divf %94, %97 : vector<16x1xf32>
    %99 = arith.mulf %96, %96 : vector<16x1xf32>
    %100 = arith.subf %98, %99 : vector<16x1xf32>
    %101 = vector.broadcast %96 : vector<16x1xf32> to vector<16x128xf32>
    %102 = arith.subf %89, %101 : vector<16x128xf32>
    %cst_54 = arith.constant 9.99999974E-6 : f32
    %103 = vector.broadcast %cst_54 : f32 to vector<16x1xf32>
    %104 = arith.addf %100, %103 : vector<16x1xf32>
    %105 = math.rsqrt %104 : vector<16x1xf32>
    %106 = vector.broadcast %105 : vector<16x1xf32> to vector<16x128xf32>
    %107 = arith.mulf %102, %106 : vector<16x128xf32>
    %108 = vector.broadcast %12 : vector<1x128xf32> to vector<16x128xf32>
    %109 = arith.mulf %107, %108 : vector<16x128xf32>
    %110 = vector.broadcast %14 : vector<1x128xf32> to vector<16x128xf32>
    %111 = arith.addf %109, %110 : vector<16x128xf32>
    %cst_55 = arith.constant dense<0.000000e+00> : vector<16x128xf32>
    %112 = tpu.matmul %111, %16, %cst_55 {dimension_numbers = #tpu.dot_dimension_numbers<[1], [0], [0], [1], [0, 0, 1, 1], [], []>} : vector<16x128xf32>, vector<128x128xf32>, vector<16x128xf32> -> vector<16x128xf32>
    %113 = vector.broadcast %18 : vector<1x128xf32> to vector<16x128xf32>
    %114 = arith.addf %112, %113 : vector<16x128xf32>
    %115 = arith.addf %114, %89 : vector<16x128xf32>
    %cst_56 = arith.constant 5.000000e-01 : f32
    %116 = vector.broadcast %cst_56 : f32 to vector<16x128xf32>
    %117 = arith.mulf %116, %115 : vector<16x128xf32>
    %cst_57 = arith.constant 0.707106769 : f32
    %118 = vector.broadcast %cst_57 : f32 to vector<16x128xf32>
    %119 = arith.mulf %115, %118 : vector<16x128xf32>
    %120 = math.erf %119 : vector<16x128xf32>
    %cst_58 = arith.constant 1.000000e+00 : f32
    %121 = vector.broadcast %cst_58 : f32 to vector<16x128xf32>
    %122 = arith.addf %121, %120 : vector<16x128xf32>
    %123 = arith.mulf %117, %122 : vector<16x128xf32>
    %c0_59 = arith.constant 0 : index
    %c0_60 = arith.constant 0 : index
    %124 = vector.load %arg16[%c0_59, %c0_60] : memref<16x128xf32, #tpu.memory_space<vmem>>, vector<16x128xf32>
    tpu.vector_store %arg16[%c0_59, %c0_60], %123 {strides = array<i32>} : memref<16x128xf32, #tpu.memory_space<vmem>>, vector<16x128xf32>,
    %c2_i32 = arith.constant 2 : i32
    %125 = arith.cmpi eq, %arg0, %c2_i32 : i32
    %126 = arith.extui %125 : i1 to i32
    %c0_i32_61 = arith.constant 0 : i32
    %127 = arith.cmpi ne, %126, %c0_i32_61 : i32
    scf.if %127 {
      %c0_62 = arith.constant 0 : index
      %c0_63 = arith.constant 0 : index
      %128 = vector.load %arg12[%c0_62, %c0_63] : memref<2x16xf32, #tpu.memory_space<vmem>>, vector<2x16xf32>
      %cst_64 = arith.constant dense<0.000000e+00> : vector<2x128xf32>
      %129 = tpu.matmul %128, %123, %cst_64 {dimension_numbers = #tpu.dot_dimension_numbers<[1], [0], [0], [1], [0, 0, 1, 1], [], []>} : vector<2x16xf32>, vector<16x128xf32>, vector<2x128xf32> -> vector<2x128xf32>
      %c0_65 = arith.constant 0 : index
      %c0_66 = arith.constant 0 : index
      %130 = vector.load %arg13[%c0_65, %c0_66] : memref<128x10xf32, #tpu.memory_space<vmem>>, vector<128x10xf32>
      %cst_67 = arith.constant dense<0.000000e+00> : vector<2x10xf32>
      %131 = tpu.matmul %129, %130, %cst_67 {dimension_numbers = #tpu.dot_dimension_numbers<[1], [0], [0], [1], [0, 0, 1, 1], [], []>} : vector<2x128xf32>, vector<128x10xf32>, vector<2x10xf32> -> vector<2x10xf32>
      %c0_68 = arith.constant 0 : index
      %c0_69 = arith.constant 0 : index
      %132 = vector.load %arg14[%c0_68, %c0_69] : memref<1x10xf32, #tpu.memory_space<vmem>>, vector<1x10xf32>
      %133 = vector.broadcast %132 : vector<1x10xf32> to vector<2x10xf32>
      %134 = arith.addf %131, %133 : vector<2x10xf32>
      %c0_70 = arith.constant 0 : index
      %c0_71 = arith.constant 0 : index
      %135 = vector.load %arg15[%c0_70, %c0_71] : memref<2x10xf32, #tpu.memory_space<vmem>>, vector<2x10xf32>
      tpu.vector_store %arg15[%c0_70, %c0_71], %134 {strides = array<i32>} : memref<2x10xf32, #tpu.memory_space<vmem>>, vector<2x10xf32>,
    } else {
    }
    return
  }
  func.func @transform_0(%arg0: i32) -> (i32, i32) {
    %c0_i32 = arith.constant 0 : i32
    %c0_i32_0 = arith.constant 0 : i32
    %c0_i32_1 = arith.constant 0 : i32
    return %c0_i32, %c0_i32_0 : i32, i32
  }
  func.func @transform_1(%arg0: i32) -> (i32, i32) {
    %c0_i32 = arith.constant 0 : i32
    %c0_i32_0 = arith.constant 0 : i32
    %c0_i32_1 = arith.constant 0 : i32
    return %c0_i32, %c0_i32_0 : i32, i32
  }
  func.func @transform_2(%arg0: i32) -> (i32, i32) {
    %c0_i32 = arith.constant 0 : i32
    %c0_i32_0 = arith.constant 0 : i32
    %c0_i32_1 = arith.constant 0 : i32
    return %c0_i32, %c0_i32_0 : i32, i32
  }
  func.func @transform_3(%arg0: i32) -> (i32, i32, i32) {
    %c0_i32 = arith.constant 0 : i32
    %c0_i32_0 = arith.constant 0 : i32
    %c0_i32_1 = arith.constant 0 : i32
    return %arg0, %c0_i32, %c0_i32_0 : i32, i32, i32
  }
  func.func @transform_4(%arg0: i32) -> (i32, i32, i32) {
    %c0_i32 = arith.constant 0 : i32
    %c0_i32_0 = arith.constant 0 : i32
    %c0_i32_1 = arith.constant 0 : i32
    return %arg0, %c0_i32, %c0_i32_0 : i32, i32, i32
  }
  func.func @transform_5(%arg0: i32) -> (i32, i32, i32) {
    %c0_i32 = arith.constant 0 : i32
    %c0_i32_0 = arith.constant 0 : i32
    %c0_i32_1 = arith.constant 0 : i32
    return %arg0, %c0_i32, %c0_i32_0 : i32, i32, i32
  }
  func.func @transform_6(%arg0: i32) -> (i32, i32, i32) {
    %c0_i32 = arith.constant 0 : i32
    %c0_i32_0 = arith.constant 0 : i32
    %c0_i32_1 = arith.constant 0 : i32
    return %arg0, %c0_i32, %c0_i32_0 : i32, i32, i32
  }
  func.func @transform_7(%arg0: i32) -> (i32, i32, i32) {
    %c0_i32 = arith.constant 0 : i32
    %c0_i32_0 = arith.constant 0 : i32
    %c0_i32_1 = arith.constant 0 : i32
    return %arg0, %c0_i32, %c0_i32_0 : i32, i32, i32
  }
  func.func @transform_8(%arg0: i32) -> (i32, i32, i32) {
    %c0_i32 = arith.constant 0 : i32
    %c0_i32_0 = arith.constant 0 : i32
    %c0_i32_1 = arith.constant 0 : i32
    return %arg0, %c0_i32, %c0_i32_0 : i32, i32, i32
  }
  func.func @transform_9(%arg0: i32) -> (i32, i32, i32) {
    %c0_i32 = arith.constant 0 : i32
    %c0_i32_0 = arith.constant 0 : i32
    %c0_i32_1 = arith.constant 0 : i32
    return %arg0, %c0_i32, %c0_i32_0 : i32, i32, i32
  }
  func.func @transform_10(%arg0: i32) -> (i32, i32, i32) {
    %c0_i32 = arith.constant 0 : i32
    %c0_i32_0 = arith.constant 0 : i32
    %c0_i32_1 = arith.constant 0 : i32
    return %arg0, %c0_i32, %c0_i32_0 : i32, i32, i32
  }
  func.func @transform_11(%arg0: i32) -> (i32, i32) {
    %c0_i32 = arith.constant 0 : i32
    %c0_i32_0 = arith.constant 0 : i32
    %c0_i32_1 = arith.constant 0 : i32
    return %c0_i32, %c0_i32_0 : i32, i32
  }
  func.func @transform_12(%arg0: i32) -> (i32, i32) {
    %c0_i32 = arith.constant 0 : i32
    %c0_i32_0 = arith.constant 0 : i32
    %c0_i32_1 = arith.constant 0 : i32
    return %c0_i32, %c0_i32_0 : i32, i32
  }
  func.func @transform_13(%arg0: i32) -> (i32, i32) {
    %c0_i32 = arith.constant 0 : i32
    %c0_i32_0 = arith.constant 0 : i32
    %c0_i32_1 = arith.constant 0 : i32
    return %c0_i32, %c0_i32_0 : i32, i32
  }
  func.func @transform_14(%arg0: i32) -> (i32, i32) {
    %c0_i32 = arith.constant 0 : i32
    %c0_i32_0 = arith.constant 0 : i32
    %c0_i32_1 = arith.constant 0 : i32
    return %c0_i32, %c0_i32_0 : i32, i32
  }
}

</mosaic_0001>

<llo_original>
// kernel: fire_svd_forward.1
$region0: #{fire_svd_forward.1}
  #allocation0 [shape = 'u32[]', space=smem, size = 0x4, offset = 0x4, fixed_abs, tag = 'smem constant byte address 0x4 - core index']
  #allocation1 [shape = 'u32[72,128]{1,0:T(1,128)}', space=vmem, size = 0x9000, scoped, tag = 'internal scratch']
  #allocation2 [shape = 'f32[16,128]{1,0:T(8,128)}', space=vmem, size = 0x2000, scoped, tag = 'scratch operand']
  %s0 = inlined_call_operand.vmem [shape: f32[16,16], index: 0, kind: input, shape index: {}]
  %s1 = inlined_call_operand.vmem [shape: f32[16,128], index: 1, kind: input, shape index: {}]
  %s2 = inlined_call_operand.vmem [shape: f32[1,128], index: 2, kind: input, shape index: {}]
  %s3 = inlined_call_operand.vmem [shape: f32[3,1,128], index: 3, kind: input, shape index: {}]
  %s4 = inlined_call_operand.vmem [shape: f32[3,1,128], index: 4, kind: input, shape index: {}]
  %s5 = inlined_call_operand.vmem [shape: f32[3,8,8], index: 5, kind: input, shape index: {}]
  %s6 = inlined_call_operand.vmem [shape: f32[3,8,128], index: 6, kind: input, shape index: {}]
  %s7 = inlined_call_operand.vmem [shape: f32[3,1,128], index: 7, kind: input, shape index: {}]
  %s8 = inlined_call_operand.vmem [shape: f32[3,1,128], index: 8, kind: input, shape index: {}]
  %s9 = inlined_call_operand.hbm [shape: f32[3,128,128], index: 9, kind: input, shape index: {}]
  %s10 = inlined_call_operand.vmem [shape: f32[3,1,128], index: 10, kind: input, shape index: {}]
  %s11 = inlined_call_operand.vmem [shape: f32[2,16], index: 11, kind: input, shape index: {}]
  %s12 = inlined_call_operand.vmem [shape: f32[128,10], index: 12, kind: input, shape index: {}]
  %s13 = inlined_call_operand.vmem [shape: f32[1,10], index: 13, kind: input, shape index: {}]
  %s14 = inlined_call_operand.hbm [shape: f32[2,10], index: 14, kind: output, shape index: {}]
  %s15 = sld [smem:[#allocation0]]
  $region101: #{fire_svd_forward.1} parent=0
    _
  %s17 = ssub.s32 1, %s15
  %s18 = scalar_select 0, %s17, %s15
  $region1: #{fire_svd_forward.1} parent=0
    #allocation3 [shape = 'u8[131072]{0}', space=vmem, size = 0x20000, scoped, tag = 'input window, operand 9']
    #allocation4 [shape = 's32[2]{0}', space=sflag, size = 0x8, scoped, tag = 'scoped memory for fire_svd_forward.1']
    #allocation5 [shape = 's32[2]{0}', space=sflag, size = 0x8, scoped, tag = 'scoped memory for fire_svd_forward.1']
    #allocation6 [shape = 'u8[1024]{0}', space=vmem, size = 0x400, scoped, tag = 'output window, operand 0, single buffered']
    %19 = vsyncpa [#allocation4], 0
    %s20 = scalar_lea.sflag [#allocation4], 1
    %21 = vsyncpa %s20, 0
    %22 = vsyncpa [#allocation5], 0
    loop: start=0, step=1, limit=5
    $region2: #{fire_svd_forward.1} parent=1 // loop_pre_header
      _
    $region3: #{fire_svd_forward.1} parent=1 // loop_header
      %s24 = sphi 0, %s28
      %p25 = scmp.ge.s32.totalorder %s24, 5
      %s32 = sphi 0, %s32
      %s34 = sphi 0, %s32
      %s35 = sphi 0, %s34
      %s49 = sphi 0, %s35
      %s53 = sphi 0, %s53
      %s55 = sphi 0, %s53
      %s56 = sphi 0, %s55
      %s70 = sphi 0, %s56
      %s74 = sphi 0, %s74
      %s76 = sphi 0, %s74
      %s77 = sphi 0, %s76
      %s91 = sphi 0, %s77
      %s97 = sphi 0, %s99
      %s100 = sphi 0, %s97
      %s101 = sphi 0, %s100
      %s117 = sphi 0, %s101
      %s123 = sphi 0, %s125
      %s126 = sphi 0, %s123
      %s127 = sphi 0, %s126
      %s143 = sphi 0, %s127
      %s149 = sphi 0, %s151
      %s152 = sphi 0, %s149
      %s153 = sphi 0, %s152
      %s169 = sphi 0, %s153
      %s175 = sphi 0, %s177
      %s178 = sphi 0, %s175
      %s179 = sphi 0, %s178
      %s195 = sphi 0, %s179
      %s201 = sphi 0, %s203
      %s204 = sphi 0, %s201
      %s205 = sphi 0, %s204
      %s221 = sphi 0, %s205
      %s227 = sphi 0, %s229
      %s230 = sphi 0, %s227
      %s231 = sphi 0, %s230
      %s247 = sphi 0, %s231
      %s253 = sphi 0, %s255
      %s256 = sphi 0, %s253
      %s257 = sphi 0, %s256
      %s273 = sphi 0, %s257
      %s279 = sphi 0, %s281
      %s282 = sphi 0, %s279
      %s283 = sphi 0, %s282
      %s299 = sphi 0, %s283
      %s303 = sphi 0, %s303
      %s305 = sphi 0, %s303
      %s306 = sphi 0, %s305
      %s320 = sphi 0, %s306
      %s324 = sphi 0, %s324
      %s326 = sphi 0, %s324
      %s327 = sphi 0, %s326
      %s341 = sphi 0, %s327
      %s345 = sphi 0, %s345
      %s347 = sphi 0, %s345
      %s348 = sphi 0, %s347
      %s362 = sphi 0, %s348
      %s366 = sphi 0, %s366
      %s368 = sphi 0, %s366
      %s369 = sphi 0, %s368
      %s383 = sphi 0, %s369
    $region4: #{fire_svd_forward.1} parent=1 // loop_header_branch
      %27 = sbr.rel (%p25) target = $region8
    $region5: #{fire_svd_forward.1} parent=1 // loop_body
      %s29 = ssub.s32 %s24, 1
      %s30 = ssub.s32 %s24, 2
      %s31 = sadd.s32 %s24, 1
      %s33 = sadd.s32 %s32, 1
      %p36 = scmp.eq.s32.totalorder %s24, 2
      %p37 = scmp.ne.s32.totalorder %s32, %s34
      %p38 = scmp.eq.s32.totalorder %s24, 0
      %p39 = por %p37, %p38
      %p40 = scmp.ne.s32.totalorder %s32, %s34
      %p41 = scmp.eq.s32.totalorder %s29, 2
      %p42 = por %p40, %p41
      %p43 = scmp.ne.s32.totalorder %s34, %s35
      %p44 = scmp.eq.s32.totalorder %s29, 0
      %p45 = por %p43, %p44
      %p46 = scmp.ne.s32.totalorder %s34, %s35
      %p47 = scmp.eq.s32.totalorder %s30, 2
      %p48 = por %p46, %p47
      %p50 = scmp.ne.s32.totalorder %s35, %s49
      %p51 = scmp.eq.s32.totalorder %s30, 0
      %p52 = por %p50, %p51
      %s54 = sadd.s32 %s53, 1
      %p57 = scmp.eq.s32.totalorder %s24, 2
      %p58 = scmp.ne.s32.totalorder %s53, %s55
      %p59 = scmp.eq.s32.totalorder %s24, 0
      %p60 = por %p58, %p59
      %p61 = scmp.ne.s32.totalorder %s53, %s55
      %p62 = scmp.eq.s32.totalorder %s29, 2
      %p63 = por %p61, %p62
      %p64 = scmp.ne.s32.totalorder %s55, %s56
      %p65 = scmp.eq.s32.totalorder %s29, 0
      %p66 = por %p64, %p65
      %p67 = scmp.ne.s32.totalorder %s55, %s56
      %p68 = scmp.eq.s32.totalorder %s30, 2
      %p69 = por %p67, %p68
      %p71 = scmp.ne.s32.totalorder %s56, %s70
      %p72 = scmp.eq.s32.totalorder %s30, 0
      %p73 = por %p71, %p72
      %s75 = sadd.s32 %s74, 1
      %p78 = scmp.eq.s32.totalorder %s24, 2
      %p79 = scmp.ne.s32.totalorder %s74, %s76
      %p80 = scmp.eq.s32.totalorder %s24, 0
      %p81 = por %p79, %p80
      %p82 = scmp.ne.s32.totalorder %s74, %s76
      %p83 = scmp.eq.s32.totalorder %s29, 2
      %p84 = por %p82, %p83
      %p85 = scmp.ne.s32.totalorder %s76, %s77
      %p86 = scmp.eq.s32.totalorder %s29, 0
      %p87 = por %p85, %p86
      %p88 = scmp.ne.s32.totalorder %s76, %s77
      %p89 = scmp.eq.s32.totalorder %s30, 2
      %p90 = por %p88, %p89
      %p92 = scmp.ne.s32.totalorder %s77, %s91
      %p93 = scmp.eq.s32.totalorder %s30, 0
      %p94 = por %p92, %p93
      %s95 = ssub.s32 %s24, %s31
      %p96 = scmp.eq.s32.totalorder %s95, 0
      %s98 = sadd.s32 %s97, 1
      %s99 = scalar_select %p96, %s97, %s98
      %p102 = pneg %p96
      %p103 = scmp.eq.s32.totalorder %s24, 2
      %p104 = por %p102, %p103
      %p105 = scmp.ne.s32.totalorder %s97, %s100
      %p106 = scmp.eq.s32.totalorder %s24, 0
      %p107 = por %p105, %p106
      %p108 = scmp.ne.s32.totalorder %s97, %s100
      %p109 = scmp.eq.s32.totalorder %s29, 2
      %p110 = por %p108, %p109
      %p111 = scmp.ne.s32.totalorder %s100, %s101
      %p112 = scmp.eq.s32.totalorder %s29, 0
      %p113 = por %p111, %p112
      %p114 = scmp.ne.s32.totalorder %s100, %s101
      %p115 = scmp.eq.s32.totalorder %s30, 2
      %p116 = por %p114, %p115
      %p118 = scmp.ne.s32.totalorder %s101, %s117
      %p119 = scmp.eq.s32.totalorder %s30, 0
      %p120 = por %p118, %p119
      %s121 = ssub.s32 %s24, %s31
      %p122 = scmp.eq.s32.totalorder %s121, 0
      %s124 = sadd.s32 %s123, 1
      %s125 = scalar_select %p122, %s123, %s124
      %p128 = pneg %p122
      %p129 = scmp.eq.s32.totalorder %s24, 2
      %p130 = por %p128, %p129
      %p131 = scmp.ne.s32.totalorder %s123, %s126
      %p132 = scmp.eq.s32.totalorder %s24, 0
      %p133 = por %p131, %p132
      %p134 = scmp.ne.s32.totalorder %s123, %s126
      %p135 = scmp.eq.s32.totalorder %s29, 2
      %p136 = por %p134, %p135
      %p137 = scmp.ne.s32.totalorder %s126, %s127
      %p138 = scmp.eq.s32.totalorder %s29, 0
      %p139 = por %p137, %p138
      %p140 = scmp.ne.s32.totalorder %s126, %s127
      %p141 = scmp.eq.s32.totalorder %s30, 2
      %p142 = por %p140, %p141
      %p144 = scmp.ne.s32.totalorder %s127, %s143
      %p145 = scmp.eq.s32.totalorder %s30, 0
      %p146 = por %p144, %p145
      %s147 = ssub.s32 %s24, %s31
      %p148 = scmp.eq.s32.totalorder %s147, 0
      %s150 = sadd.s32 %s149, 1
      %s151 = scalar_select %p148, %s149, %s150
      %p154 = pneg %p148
      %p155 = scmp.eq.s32.totalorder %s24, 2
      %p156 = por %p154, %p155
      %p157 = scmp.ne.s32.totalorder %s149, %s152
      %p158 = scmp.eq.s32.totalorder %s24, 0
      %p159 = por %p157, %p158
      %p160 = scmp.ne.s32.totalorder %s149, %s152
      %p161 = scmp.eq.s32.totalorder %s29, 2
      %p162 = por %p160, %p161
      %p163 = scmp.ne.s32.totalorder %s152, %s153
      %p164 = scmp.eq.s32.totalorder %s29, 0
      %p165 = por %p163, %p164
      %p166 = scmp.ne.s32.totalorder %s152, %s153
      %p167 = scmp.eq.s32.totalorder %s30, 2
      %p168 = por %p166, %p167
      %p170 = scmp.ne.s32.totalorder %s153, %s169
      %p171 = scmp.eq.s32.totalorder %s30, 0
      %p172 = por %p170, %p171
      %s173 = ssub.s32 %s24, %s31
      %p174 = scmp.eq.s32.totalorder %s173, 0
      %s176 = sadd.s32 %s175, 1
      %s177 = scalar_select %p174, %s175, %s176
      %p180 = pneg %p174
      %p181 = scmp.eq.s32.totalorder %s24, 2
      %p182 = por %p180, %p181
      %p183 = scmp.ne.s32.totalorder %s175, %s178
      %p184 = scmp.eq.s32.totalorder %s24, 0
      %p185 = por %p183, %p184
      %p186 = scmp.ne.s32.totalorder %s175, %s178
      %p187 = scmp.eq.s32.totalorder %s29, 2
      %p188 = por %p186, %p187
      %p189 = scmp.ne.s32.totalorder %s178, %s179
      %p190 = scmp.eq.s32.totalorder %s29, 0
      %p191 = por %p189, %p190
      %p192 = scmp.ne.s32.totalorder %s178, %s179
      %p193 = scmp.eq.s32.totalorder %s30, 2
      %p194 = por %p192, %p193
      %p196 = scmp.ne.s32.totalorder %s179, %s195
      %p197 = scmp.eq.s32.totalorder %s30, 0
      %p198 = por %p196, %p197
      %s199 = ssub.s32 %s24, %s31
      %p200 = scmp.eq.s32.totalorder %s199, 0
      %s202 = sadd.s32 %s201, 1
      %s203 = scalar_select %p200, %s201, %s202
      %p206 = pneg %p200
      %p207 = scmp.eq.s32.totalorder %s24, 2
      %p208 = por %p206, %p207
      %p209 = scmp.ne.s32.totalorder %s201, %s204
      %p210 = scmp.eq.s32.totalorder %s24, 0
      %p211 = por %p209, %p210
      %p212 = scmp.ne.s32.totalorder %s201, %s204
      %p213 = scmp.eq.s32.totalorder %s29, 2
      %p214 = por %p212, %p213
      %p215 = scmp.ne.s32.totalorder %s204, %s205
      %p216 = scmp.eq.s32.totalorder %s29, 0
      %p217 = por %p215, %p216
      %p218 = scmp.ne.s32.totalorder %s204, %s205
      %p219 = scmp.eq.s32.totalorder %s30, 2
      %p220 = por %p218, %p219
      %p222 = scmp.ne.s32.totalorder %s205, %s221
      %p223 = scmp.eq.s32.totalorder %s30, 0
      %p224 = por %p222, %p223
      %s225 = ssub.s32 %s24, %s31
      %p226 = scmp.eq.s32.totalorder %s225, 0
      %s228 = sadd.s32 %s227, 1
      %s229 = scalar_select %p226, %s227, %s228
      %p232 = pneg %p226
      %p233 = scmp.eq.s32.totalorder %s24, 2
      %p234 = por %p232, %p233
      %p235 = scmp.ne.s32.totalorder %s227, %s230
      %p236 = scmp.eq.s32.totalorder %s24, 0
      %p237 = por %p235, %p236
      %p238 = scmp.ne.s32.totalorder %s227, %s230
      %p239 = scmp.eq.s32.totalorder %s29, 2
      %p240 = por %p238, %p239
      %p241 = scmp.ne.s32.totalorder %s230, %s231
      %p242 = scmp.eq.s32.totalorder %s29, 0
      %p243 = por %p241, %p242
      %p244 = scmp.ne.s32.totalorder %s230, %s231
      %p245 = scmp.eq.s32.totalorder %s30, 2
      %p246 = por %p244, %p245
      %p248 = scmp.ne.s32.totalorder %s231, %s247
      %p249 = scmp.eq.s32.totalorder %s30, 0
      %p250 = por %p248, %p249
      %s251 = ssub.s32 %s24, %s31
      %p252 = scmp.eq.s32.totalorder %s251, 0
      %s254 = sadd.s32 %s253, 1
      %s255 = scalar_select %p252, %s253, %s254
      %p258 = pneg %p252
      %p259 = scmp.eq.s32.totalorder %s24, 2
      %p260 = por %p258, %p259
      %p261 = scmp.ne.s32.totalorder %s253, %s256
      %p262 = scmp.eq.s32.totalorder %s24, 0
      %p263 = por %p261, %p262
      %p264 = scmp.ne.s32.totalorder %s253, %s256
      %p265 = scmp.eq.s32.totalorder %s29, 2
      %p266 = por %p264, %p265
      %p267 = scmp.ne.s32.totalorder %s256, %s257
      %p268 = scmp.eq.s32.totalorder %s29, 0
      %p269 = por %p267, %p268
      %p270 = scmp.ne.s32.totalorder %s256, %s257
      %p271 = scmp.eq.s32.totalorder %s30, 2
      %p272 = por %p270, %p271
      %p274 = scmp.ne.s32.totalorder %s257, %s273
      %p275 = scmp.eq.s32.totalorder %s30, 0
      %p276 = por %p274, %p275
      %s277 = ssub.s32 %s24, %s31
      %p278 = scmp.eq.s32.totalorder %s277, 0
      %s280 = sadd.s32 %s279, 1
      %s281 = scalar_select %p278, %s279, %s280
      %p284 = pneg %p278
      %p285 = scmp.eq.s32.totalorder %s24, 2
      %p286 = por %p284, %p285
      %p287 = scmp.ne.s32.totalorder %s279, %s282
      %p288 = scmp.eq.s32.totalorder %s24, 0
      %p289 = por %p287, %p288
      %p290 = scmp.ne.s32.totalorder %s279, %s282
      %p291 = scmp.eq.s32.totalorder %s29, 2
      %p292 = por %p290, %p291
      %p293 = scmp.ne.s32.totalorder %s282, %s283
      %p294 = scmp.eq.s32.totalorder %s29, 0
      %p295 = por %p293, %p294
      %p296 = scmp.ne.s32.totalorder %s282, %s283
      %p297 = scmp.eq.s32.totalorder %s30, 2
      %p298 = por %p296, %p297
      %p300 = scmp.ne.s32.totalorder %s283, %s299
      %p301 = scmp.eq.s32.totalorder %s30, 0
      %p302 = por %p300, %p301
      %s304 = sadd.s32 %s303, 1
      %p307 = scmp.eq.s32.totalorder %s24, 2
      %p308 = scmp.ne.s32.totalorder %s303, %s305
      %p309 = scmp.eq.s32.totalorder %s24, 0
      %p310 = por %p308, %p309
      %p311 = scmp.ne.s32.totalorder %s303, %s305
      %p312 = scmp.eq.s32.totalorder %s29, 2
      %p313 = por %p311, %p312
      %p314 = scmp.ne.s32.totalorder %s305, %s306
      %p315 = scmp.eq.s32.totalorder %s29, 0
      %p316 = por %p314, %p315
      %p317 = scmp.ne.s32.totalorder %s305, %s306
      %p318 = scmp.eq.s32.totalorder %s30, 2
      %p319 = por %p317, %p318
      %p321 = scmp.ne.s32.totalorder %s306, %s320
      %p322 = scmp.eq.s32.totalorder %s30, 0
      %p323 = por %p321, %p322
      %s325 = sadd.s32 %s324, 1
      %p328 = scmp.eq.s32.totalorder %s24, 2
      %p329 = scmp.ne.s32.totalorder %s324, %s326
      %p330 = scmp.eq.s32.totalorder %s24, 0
      %p331 = por %p329, %p330
      %p332 = scmp.ne.s32.totalorder %s324, %s326
      %p333 = scmp.eq.s32.totalorder %s29, 2
      %p334 = por %p332, %p333
      %p335 = scmp.ne.s32.totalorder %s326, %s327
      %p336 = scmp.eq.s32.totalorder %s29, 0
      %p337 = por %p335, %p336
      %p338 = scmp.ne.s32.totalorder %s326, %s327
      %p339 = scmp.eq.s32.totalorder %s30, 2
      %p340 = por %p338, %p339
      %p342 = scmp.ne.s32.totalorder %s327, %s341
      %p343 = scmp.eq.s32.totalorder %s30, 0
      %p344 = por %p342, %p343
      %s346 = sadd.s32 %s345, 1
      %p349 = scmp.eq.s32.totalorder %s24, 2
      %p350 = scmp.ne.s32.totalorder %s345, %s347
      %p351 = scmp.eq.s32.totalorder %s24, 0
      %p352 = por %p350, %p351
      %p353 = scmp.ne.s32.totalorder %s345, %s347
      %p354 = scmp.eq.s32.totalorder %s29, 2
      %p355 = por %p353, %p354
      %p356 = scmp.ne.s32.totalorder %s347, %s348
      %p357 = scmp.eq.s32.totalorder %s29, 0
      %p358 = por %p356, %p357
      %p359 = scmp.ne.s32.totalorder %s347, %s348
      %p360 = scmp.eq.s32.totalorder %s30, 2
      %p361 = por %p359, %p360
      %p363 = scmp.ne.s32.totalorder %s348, %s362
      %p364 = scmp.eq.s32.totalorder %s30, 0
      %p365 = por %p363, %p364
      %s367 = sadd.s32 %s366, 1
      %p370 = scmp.eq.s32.totalorder %s24, 2
      %p371 = scmp.ne.s32.totalorder %s366, %s368
      %p372 = scmp.eq.s32.totalorder %s24, 0
      %p373 = por %p371, %p372
      %p374 = scmp.ne.s32.totalorder %s366, %s368
      %p375 = scmp.eq.s32.totalorder %s29, 2
      %p376 = por %p374, %p375
      %p377 = scmp.ne.s32.totalorder %s368, %s369
      %p378 = scmp.eq.s32.totalorder %s29, 0
      %p379 = por %p377, %p378
      %p380 = scmp.ne.s32.totalorder %s368, %s369
      %p381 = scmp.eq.s32.totalorder %s30, 2
      %p382 = por %p380, %p381
      %p384 = scmp.ne.s32.totalorder %s369, %s383
      %p385 = scmp.eq.s32.totalorder %s30, 0
      %p386 = por %p384, %p385
      %p387 = scmp.le.s32.totalorder 1, %s24
      %p388 = scmp.lt.s32.totalorder %s24, 4
      %p389 = pnand %p387, %p388
      %p390 = pneg %p389
      // Predicated region
      $region9: #{fire_svd_forward.1} parent=5 // pred_check
        _
      $region10: #{fire_svd_forward.1} parent=5 // pred_check_branch
        %392 = sbr.rel (%p389) target = $region12
      $region11: #{fire_svd_forward.1} parent=5 // pred_region
        %s393 = ssub.s32 %s24, 1
        // Predicated region
        $region13: #{fire_svd_forward.1} parent=11 // pred_check
          %p394 = pneg %p45
        $region14: #{fire_svd_forward.1} parent=11 // pred_check_branch
          %396 = sbr.rel (%p394) target = $region16
        $region15: #{fire_svd_forward.1} parent=11 // pred_region
          _
        $region16: #{fire_svd_forward.1} parent=11 // pred_fallthru
          _
        // Predicated region
        $region17: #{fire_svd_forward.1} parent=11 // pred_check
          %p397 = pneg %p66
        $region18: #{fire_svd_forward.1} parent=11 // pred_check_branch
          %399 = sbr.rel (%p397) target = $region20
        $region19: #{fire_svd_forward.1} parent=11 // pred_region
          _
        $region20: #{fire_svd_forward.1} parent=11 // pred_fallthru
          _
        // Predicated region
        $region21: #{fire_svd_forward.1} parent=11 // pred_check
          %p400 = pneg %p87
        $region22: #{fire_svd_forward.1} parent=11 // pred_check_branch
          %402 = sbr.rel (%p400) target = $region24
        $region23: #{fire_svd_forward.1} parent=11 // pred_region
          _
        $region24: #{fire_svd_forward.1} parent=11 // pred_fallthru
          _
        // Predicated region
        $region25: #{fire_svd_forward.1} parent=11 // pred_check
          %p403 = pneg %p316
        $region26: #{fire_svd_forward.1} parent=11 // pred_check_branch
          %405 = sbr.rel (%p403) target = $region28
        $region27: #{fire_svd_forward.1} parent=11 // pred_region
          _
        $region28: #{fire_svd_forward.1} parent=11 // pred_fallthru
          _
        // Predicated region
        $region29: #{fire_svd_forward.1} parent=11 // pred_check
          %p406 = pneg %p337
        $region30: #{fire_svd_forward.1} parent=11 // pred_check_branch
          %408 = sbr.rel (%p406) target = $region32
        $region31: #{fire_svd_forward.1} parent=11 // pred_region
          _
        $region32: #{fire_svd_forward.1} parent=11 // pred_fallthru
          _
        // Predicated region
        $region33: #{fire_svd_forward.1} parent=11 // pred_check
          %p409 = pneg %p358
        $region34: #{fire_svd_forward.1} parent=11 // pred_check_branch
          %411 = sbr.rel (%p409) target = $region36
        $region35: #{fire_svd_forward.1} parent=11 // pred_region
          _
        $region36: #{fire_svd_forward.1} parent=11 // pred_fallthru
          _
      $region12: #{fire_svd_forward.1} parent=5 // pred_fallthru
        _
      %p412 = scmp.lt.s32.totalorder %s24, 3
      // Predicated region
      $region37: #{fire_svd_forward.1} parent=5 // pred_check
        %p413 = pneg %p412
      $region38: #{fire_svd_forward.1} parent=5 // pred_check_branch
        %415 = sbr.rel (%p413) target = $region40
      $region39: #{fire_svd_forward.1} parent=5 // pred_region
        // Predicated region
        $region41: #{fire_svd_forward.1} parent=39 // pred_check
          %p416 = pneg %p107
        $region42: #{fire_svd_forward.1} parent=39 // pred_check_branch
          %418 = sbr.rel (%p416) target = $region44
        $region43: #{fire_svd_forward.1} parent=39 // pred_region
          %p419 = scmp.lt.s32.totalorder %s24, 2
          %s420 = scalar_select %p419, %s24, 2
          %s421 = scalar_lea.vmem %s3, %s420
        $region44: #{fire_svd_forward.1} parent=39 // pred_fallthru
          _
        // Predicated region
        $region45: #{fire_svd_forward.1} parent=39 // pred_check
          %p422 = pneg %p133
        $region46: #{fire_svd_forward.1} parent=39 // pred_check_branch
          %424 = sbr.rel (%p422) target = $region48
        $region47: #{fire_svd_forward.1} parent=39 // pred_region
          %p425 = scmp.lt.s32.totalorder %s24, 2
          %s426 = scalar_select %p425, %s24, 2
          %s427 = scalar_lea.vmem %s4, %s426
        $region48: #{fire_svd_forward.1} parent=39 // pred_fallthru
          _
        // Predicated region
        $region49: #{fire_svd_forward.1} parent=39 // pred_check
          %p428 = pneg %p159
        $region50: #{fire_svd_forward.1} parent=39 // pred_check_branch
          %430 = sbr.rel (%p428) target = $region52
        $region51: #{fire_svd_forward.1} parent=39 // pred_region
          %p431 = scmp.lt.s32.totalorder %s24, 2
          %s432 = scalar_select %p431, %s24, 2
          %s433 = smul.addr %s432, 8
          %s434 = scalar_lea.vmem %s5, %s433
        $region52: #{fire_svd_forward.1} parent=39 // pred_fallthru
          _
        // Predicated region
        $region53: #{fire_svd_forward.1} parent=39 // pred_check
          %p435 = pneg %p185
        $region54: #{fire_svd_forward.1} parent=39 // pred_check_branch
          %437 = sbr.rel (%p435) target = $region56
        $region55: #{fire_svd_forward.1} parent=39 // pred_region
          %p438 = scmp.lt.s32.totalorder %s24, 2
          %s439 = scalar_select %p438, %s24, 2
          %s440 = smul.addr %s439, 8
          %s441 = scalar_lea.vmem %s6, %s440
        $region56: #{fire_svd_forward.1} parent=39 // pred_fallthru
          _
        // Predicated region
        $region57: #{fire_svd_forward.1} parent=39 // pred_check
          %p442 = pneg %p211
        $region58: #{fire_svd_forward.1} parent=39 // pred_check_branch
          %444 = sbr.rel (%p442) target = $region60
        $region59: #{fire_svd_forward.1} parent=39 // pred_region
          %p445 = scmp.lt.s32.totalorder %s24, 2
          %s446 = scalar_select %p445, %s24, 2
          %s447 = scalar_lea.vmem %s7, %s446
        $region60: #{fire_svd_forward.1} parent=39 // pred_fallthru
          _
        // Predicated region
        $region61: #{fire_svd_forward.1} parent=39 // pred_check
          %p448 = pneg %p237
        $region62: #{fire_svd_forward.1} parent=39 // pred_check_branch
          %450 = sbr.rel (%p448) target = $region64
        $region63: #{fire_svd_forward.1} parent=39 // pred_region
          %p451 = scmp.lt.s32.totalorder %s24, 2
          %s452 = scalar_select %p451, %s24, 2
          %s453 = scalar_lea.vmem %s8, %s452
        $region64: #{fire_svd_forward.1} parent=39 // pred_fallthru
          _
        // Predicated region
        $region65: #{fire_svd_forward.1} parent=39 // pred_check
          %p454 = pneg %p263
        $region66: #{fire_svd_forward.1} parent=39 // pred_check_branch
          %456 = sbr.rel (%p454) target = $region68
        $region67: #{fire_svd_forward.1} parent=39 // pred_region
          %s457 = sand.u32 %s253, 1
          %s458 = scalar_lea.sflag [#allocation4], %s457
          %s459 = sand.u32 %s253, 1
          %s460 = smul.addr %s459, 128
          %s461 = scalar_lea.vmem [#allocation3], %s460
          %463 = vsyncadd %s458, 0
          %s464 = smul.addr %s24, 16
          %s465 = smul.addr %s464, 8
          %s466 = scalar_lea.hbm %s9, %s465
          %s467 = sshll.u32 %s466, 4
          %s468 = int_to_ptr.hbm [resolvable:$true] %s467
          %s469 = sshll.u32 %s461, 4
          %s470 = int_to_ptr.vmem [resolvable:$true] %s469
          %475 = dma.hbm_to_vmem [thread:$0]  %s468, 2048, %s470, %s458, 128, 128, 8
        $region68: #{fire_svd_forward.1} parent=39 // pred_fallthru
          _
        // Predicated region
        $region69: #{fire_svd_forward.1} parent=39 // pred_check
          %p476 = pneg %p289
        $region70: #{fire_svd_forward.1} parent=39 // pred_check_branch
          %478 = sbr.rel (%p476) target = $region72
        $region71: #{fire_svd_forward.1} parent=39 // pred_region
          %p479 = scmp.lt.s32.totalorder %s24, 2
          %s480 = scalar_select %p479, %s24, 2
          %s481 = scalar_lea.vmem %s10, %s480
        $region72: #{fire_svd_forward.1} parent=39 // pred_fallthru
          _
      $region40: #{fire_svd_forward.1} parent=5 // pred_fallthru
        _
      %p482 = scmp.le.s32.totalorder 1, %s24
      %p483 = scmp.lt.s32.totalorder %s24, 4
      %p484 = pnand %p482, %p483
      %p485 = pneg %p484
      // Predicated region
      $region73: #{fire_svd_forward.1} parent=5 // pred_check
        _
      $region74: #{fire_svd_forward.1} parent=5 // pred_check_branch
        %487 = sbr.rel (%p484) target = $region76
      $region75: #{fire_svd_forward.1} parent=5 // pred_region
        %s488 = ssub.s32 %s24, 1
        %s489 = sand.u32 %s256, 1
        %s490 = scalar_lea.sflag [#allocation4], %s489
        %s491 = sand.u32 %s256, 1
        %s492 = smul.addr %s491, 128
        %s493 = scalar_lea.vmem [#allocation3], %s492
        // Predicated region
        $region77: #{fire_svd_forward.1} parent=75 // pred_check
          %p494 = pneg %p269
        $region78: #{fire_svd_forward.1} parent=75 // pred_check_branch
          %496 = sbr.rel (%p494) target = $region80
        $region79: #{fire_svd_forward.1} parent=75 // pred_region
          %498 = dma.done %s490, 2048
        $region80: #{fire_svd_forward.1} parent=75 // pred_fallthru
          _
        %p499 = pneg %p45
        %p500 = pneg %p42
        %p501 = pneg %p66
        %p502 = pneg %p63
        %p503 = pneg %p87
        %p504 = pneg %p84
        %p505 = scmp.lt.s32.totalorder %s29, 2
        %s506 = scalar_select %p505, %s29, 2
        %s507 = scalar_lea.vmem %s3, %s506
        %p508 = pneg %p113
        %p509 = pneg %p110
        %p510 = scmp.lt.s32.totalorder %s29, 2
        %s511 = scalar_select %p510, %s29, 2
        %s512 = scalar_lea.vmem %s4, %s511
        %p513 = pneg %p139
        %p514 = pneg %p136
        %p515 = scmp.lt.s32.totalorder %s29, 2
        %s516 = scalar_select %p515, %s29, 2
        %s517 = smul.addr %s516, 8
        %s518 = scalar_lea.vmem %s5, %s517
        %p519 = pneg %p165
        %p520 = pneg %p162
        %p521 = scmp.lt.s32.totalorder %s29, 2
        %s522 = scalar_select %p521, %s29, 2
        %s523 = smul.addr %s522, 8
        %s524 = scalar_lea.vmem %s6, %s523
        %p525 = pneg %p191
        %p526 = pneg %p188
        %p527 = scmp.lt.s32.totalorder %s29, 2
        %s528 = scalar_select %p527, %s29, 2
        %s529 = scalar_lea.vmem %s7, %s528
        %p530 = pneg %p217
        %p531 = pneg %p214
        %p532 = scmp.lt.s32.totalorder %s29, 2
        %s533 = scalar_select %p532, %s29, 2
        %s534 = scalar_lea.vmem %s8, %s533
        %p535 = pneg %p243
        %p536 = pneg %p240
        %s537 = sand.u32 %s256, 1
        %s538 = scalar_lea.sflag [#allocation4], %s537
        %s539 = sand.u32 %s256, 1
        %s540 = smul.addr %s539, 128
        %s541 = scalar_lea.vmem [#allocation3], %s540
        %p542 = pneg %p269
        %p543 = pneg %p266
        %p544 = scmp.lt.s32.totalorder %s29, 2
        %s545 = scalar_select %p544, %s29, 2
        %s546 = scalar_lea.vmem %s10, %s545
        %p547 = pneg %p295
        %p548 = pneg %p292
        %p549 = pneg %p316
        %p550 = pneg %p313
        %p551 = pneg %p337
        %p552 = pneg %p334
        %p553 = pneg %p358
        %p554 = pneg %p355
        %p555 = pneg %p379
        %p556 = pneg %p376
        %p557 = scmp.lt.s32.totalorder %s29, 2
        %s558 = scalar_select %p557, %s29, 2
        %s559 = scalar_lea.vmem %s3, %s558
        %p560 = scmp.lt.s32.totalorder %s29, 2
        %s561 = scalar_select %p560, %s29, 2
        %s562 = scalar_lea.vmem %s4, %s561
        %p563 = scmp.lt.s32.totalorder %s29, 2
        %s564 = scalar_select %p563, %s29, 2
        %s565 = smul.addr %s564, 8
        %s566 = scalar_lea.vmem %s5, %s565
        %p567 = scmp.lt.s32.totalorder %s29, 2
        %s568 = scalar_select %p567, %s29, 2
        %s569 = smul.addr %s568, 8
        %s570 = scalar_lea.vmem %s6, %s569
        %p571 = scmp.lt.s32.totalorder %s29, 2
        %s572 = scalar_select %p571, %s29, 2
        %s573 = scalar_lea.vmem %s7, %s572
        %p574 = scmp.lt.s32.totalorder %s29, 2
        %s575 = scalar_select %p574, %s29, 2
        %s576 = scalar_lea.vmem %s8, %s575
        %p577 = scmp.lt.s32.totalorder %s29, 2
        %s578 = scalar_select %p577, %s29, 2
        %s579 = scalar_lea.vmem %s10, %s578
        %p580 = scmp.eq.s32.totalorder %s29, 0
        // Predicated region
        $region81: #{fire_svd_forward.1} parent=75 // pred_check
          %p581 = pneg %p580
        $region82: #{fire_svd_forward.1} parent=75 // pred_check_branch
          %583 = sbr.rel (%p581) target = $region84
        $region83: #{fire_svd_forward.1} parent=75 // pred_region
          %v584 = vld [vmem:[%s0] sm:$0xff]
          %v585 = vld [vmem:[%s0 + $0x8] sm:$0xff]
          %v586 = vld [vmem:[%s1] sm:$0xff]
          %v587 = vld [vmem:[%s1 + $0x8] sm:$0xff]
          %v588 = vld [vmem:[%s2] sm:$0x1]
          %v590 = vperm.slane %v588, 0
          %vm592 = vcmask 130048
          %v594 = vsel %vm592, %v584, 0
          %v597 = vsel %vm592, %v585, 0
          %599 = vmatpush.msra.mxu0 0.0
          %600 = vmatpush.msra.mxu0 0.0
          %601 = vmatpush.msra.mxu0 0.0
          %602 = vmatpush.msra.mxu0 0.0
          %603 = vmatpush.msra.mxu0 0.0
          %604 = vmatpush.msra.mxu0 0.0
          %605 = vmatpush.msra.mxu0 0.0
          %606 = vmatpush.msra.mxu0 0.0
          %607 = vmatpush.msra.mxu0 0.0
          %608 = vmatpush.msra.mxu0 0.0
          %609 = vmatpush.msra.mxu0 0.0
          %610 = vmatpush.msra.mxu0 0.0
          %611 = vmatpush.msra.mxu0 0.0
          %612 = vmatpush.msra.mxu0 0.0
          %613 = vmatpush.msra.mxu0 %v587
          %614 = vmatpush.msra.mxu0 %v586
          %615 = vmatmul.f32.gmra.mxu0 %v594
          %v616 = vpop.f32.mrf.mxu0
          %v617 = vadd.f32 %v590, %v616
          %618 = vmatmul.f32.gmra.mxu0 %v597
          %v619 = vpop.f32.mrf.mxu0
          %v620 = vadd.f32 %v590, %v619
          %621 = vdwg.mxu0
          %622 = vst [vmem:[#allocation2] sm:$0xff] %v617
          %623 = vst [vmem:[#allocation2 + $0x8] sm:$0xff] %v620
        $region84: #{fire_svd_forward.1} parent=75 // pred_fallthru
          _
        %v624 = vld [vmem:[%s559] sm:$0x1]
        %v625 = vld [vmem:[%s562] sm:$0x1]
        %v626 = vld [vmem:[%s566] sm:$0xff]
        %v627 = vld [vmem:[%s570] sm:$0xff]
        %v628 = vld [vmem:[%s573] sm:$0x1]
        %v629 = vld [vmem:[%s576] sm:$0x1]
        %v630 = vld [vmem:[%s493] sm:$0xff]
        %v631 = vld [vmem:[%s493 + $0x8] sm:$0xff]
        %v632 = vld [vmem:[%s493 + $0x10] sm:$0xff]
        %v633 = vld [vmem:[%s493 + $0x18] sm:$0xff]
        %v634 = vld [vmem:[%s493 + $0x20] sm:$0xff]
        %v635 = vld [vmem:[%s493 + $0x28] sm:$0xff]
        %v636 = vld [vmem:[%s493 + $0x30] sm:$0xff]
        %v637 = vld [vmem:[%s493 + $0x38] sm:$0xff]
        %v638 = vld [vmem:[%s493 + $0x40] sm:$0xff]
        %v639 = vld [vmem:[%s493 + $0x48] sm:$0xff]
        %v640 = vld [vmem:[%s493 + $0x50] sm:$0xff]
        %v641 = vld [vmem:[%s493 + $0x58] sm:$0xff]
        %v642 = vld [vmem:[%s493 + $0x60] sm:$0xff]
        %v643 = vld [vmem:[%s493 + $0x68] sm:$0xff]
        %v644 = vld [vmem:[%s493 + $0x70] sm:$0xff]
        %v645 = vld [vmem:[%s493 + $0x78] sm:$0xff]
        %v646 = vld [vmem:[%s579] sm:$0x1]
        %v647 = vld [vmem:[#allocation2] sm:$0xff]
        %648 = vadd.xlane.f32.xlu0 %v647
        %v649 = vpop.xlane.xlu0 %648
        %v650 = vmul.f32 %v647, %v647
        %651 = vadd.xlane.f32.xlu0 %v650
        %v652 = vpop.xlane.xlu0 %651
        %v653 = vrcp.pop 128.0
        %v654 = vmul.f32 128.0, %v653
        %v655 = vsub.f32 1.0, %v654
        %v656 = vmul.f32 %v653, %v655
        %v657 = vadd.f32 %v653, %v656
        %vm658 = vweird.f32 %v653
        %v659 = vsel %vm658, %v653, %v657
        %v660 = vmul.f32 %v649, %v659
        %v661 = vmul.f32 %v652, %v659
        %v662 = vmul.f32 %v660, %v660
        %v663 = vsub.f32 %v661, %v662
        %v664 = vsub.f32 %v647, %v660
        %v665 = vadd.f32 %v663, 1e-05
        %v666 = vrsqrt.pop %v665
        %v667 = vmul.f32 %v666, %v665
        %v668 = vmul.f32 %v667, %v666
        %v669 = vmul.f32 0.5, %v668
        %v670 = vsub.f32 1.5, %v669
        %v671 = vmul.f32 %v666, %v670
        %vm672 = vweird.f32 %v665
        %vm673 = vweird.f32 %v666
        %vm674 = vmor %vm672, %vm673
        %v675 = vsel %vm674, %v666, %v671
        %v676 = vmul.f32 %v664, %v675
        %v678 = vperm.slane %v624, 0
        %v680 = vmul.f32 %v676, %v678
        %v682 = vperm.slane %v625, 0
        %v684 = vadd.f32 %v680, %v682
        %vm685 = vcmask 64512
        %v687 = vsel %vm685, %v626, 0
        %689 = vmatpush.msra.mxu0 0.0
        %690 = vmatpush.msra.mxu0 0.0
        %691 = vmatpush.msra.mxu0 0.0
        %692 = vmatpush.msra.mxu0 0.0
        %693 = vmatpush.msra.mxu0 0.0
        %694 = vmatpush.msra.mxu0 0.0
        %695 = vmatpush.msra.mxu0 0.0
        %696 = vmatpush.msra.mxu0 0.0
        %697 = vmatpush.msra.mxu0 0.0
        %698 = vmatpush.msra.mxu0 0.0
        %699 = vmatpush.msra.mxu0 0.0
        %700 = vmatpush.msra.mxu0 0.0
        %701 = vmatpush.msra.mxu0 0.0
        %702 = vmatpush.msra.mxu0 0.0
        %703 = vmatpush.msra.mxu0 0.0
        %704 = vmatpush.msra.mxu0 %v684
        %705 = vmatmul.f32.gmra.mxu0 %v687
        %v706 = vpop.f32.mrf.mxu0
        %v707 = vadd.f32 %v627, %v706
        %708 = vdwg.mxu0
        %v709 = vadd.f32 %v707, %v647
        %v710 = vmul.f32 %v709, 0.5
        %v711 = vmul.f32 %v709, 0.70710677
        %v712 = vmul.f32 %v711, %v711
        %v713 = vmin.f32 16.0, %v712
        %v714 = vmul.f32 %v713, 2.1237322e-06
        %v715 = vadd.f32 %v714, 0.00028619796
        %v716 = vmul.f32 %v713, %v715
        %v717 = vadd.f32 %v716, 0.0036580483
        %v718 = vmul.f32 %v713, %v717
        %v719 = vadd.f32 %v718, 0.05243302
        %v720 = vmul.f32 %v713, %v719
        %v721 = vadd.f32 %v720, 0.18741608
        %v722 = vmul.f32 %v713, %v721
        %v723 = vadd.f32 %v722, 1.1283791
        %v724 = vmul.f32 %v711, %v723
        %v725 = vmul.f32 %v713, 3.8918573e-05
        %v726 = vadd.f32 %v725, 0.001143296
        %v727 = vmul.f32 %v713, %v726
        %v728 = vadd.f32 %v727, 0.014752088
        %v729 = vmul.f32 %v713, %v728
        %v730 = vadd.f32 %v729, 0.112945676
        %v731 = vmul.f32 %v713, %v730
        %v732 = vadd.f32 %v731, 0.4994258
        %v733 = vmul.f32 %v713, %v732
        %v734 = vadd.f32 %v733, 1.0
        %v735 = vrcp.pop %v734
        %v736 = vmul.f32 %v734, %v735
        %v737 = vsub.f32 1.0, %v736
        %v738 = vmul.f32 %v735, %v737
        %v739 = vadd.f32 %v735, %v738
        %vm740 = vweird.f32 %v734
        %vm741 = vweird.f32 %v735
        %vm742 = vmor %vm740, %vm741
        %v743 = vsel %vm742, %v735, %v739
        %v744 = vand.u32 2147483647, %v734
        %vm745 = vcmp.eq.f32.partialorder %v744, 8.507059e+37
        %v746 = vand.u32 %v734, 2147483648
        %v747 = vor.u32 1.1754944e-38, %v746
        %v748 = vsel %vm745, %v747, %v743
        %v749 = vmul.f32 %v724, %v748
        %v750 = vmin.f32 %v749, 1.0
        %v751 = vmax.f32 %v750, -1.0
        %v752 = vadd.f32 %v751, 1.0
        %v753 = vmul.f32 %v710, %v752
        %754 = vst [vmem:[#allocation2] sm:$0xff] %v753
        %v755 = vld [vmem:[#allocation2 + $0x8] sm:$0xff]
        %756 = vadd.xlane.f32.xlu0 %v755
        %v757 = vpop.xlane.xlu0 %756
        %v758 = vmul.f32 %v755, %v755
        %759 = vadd.xlane.f32.xlu0 %v758
        %v760 = vpop.xlane.xlu0 %759
        %v761 = vmul.f32 %v757, %v659
        %v762 = vmul.f32 %v760, %v659
        %v763 = vmul.f32 %v761, %v761
        %v764 = vsub.f32 %v762, %v763
        %v765 = vsub.f32 %v755, %v761
        %v766 = vadd.f32 %v764, 1e-05
        %v767 = vrsqrt.pop %v766
        %v768 = vmul.f32 %v767, %v766
        %v769 = vmul.f32 %v768, %v767
        %v770 = vmul.f32 0.5, %v769
        %v771 = vsub.f32 1.5, %v770
        %v772 = vmul.f32 %v767, %v771
        %vm773 = vweird.f32 %v766
        %vm774 = vweird.f32 %v767
        %vm775 = vmor %vm773, %vm774
        %v776 = vsel %vm775, %v767, %v772
        %v777 = vmul.f32 %v765, %v776
        %v778 = vmul.f32 %v777, %v678
        %v779 = vadd.f32 %v778, %v682
        %780 = vmatpush.msra.mxu0 0.0
        %781 = vmatpush.msra.mxu0 0.0
        %782 = vmatpush.msra.mxu0 0.0
        %783 = vmatpush.msra.mxu0 0.0
        %784 = vmatpush.msra.mxu0 0.0
        %785 = vmatpush.msra.mxu0 0.0
        %786 = vmatpush.msra.mxu0 0.0
        %787 = vmatpush.msra.mxu0 0.0
        %788 = vmatpush.msra.mxu0 0.0
        %789 = vmatpush.msra.mxu0 0.0
        %790 = vmatpush.msra.mxu0 0.0
        %791 = vmatpush.msra.mxu0 0.0
        %792 = vmatpush.msra.mxu0 0.0
        %793 = vmatpush.msra.mxu0 0.0
        %794 = vmatpush.msra.mxu0 0.0
        %795 = vmatpush.msra.mxu0 %v779
        %796 = vmatmul.f32.gmra.mxu0 %v687
        %v797 = vpop.f32.mrf.mxu0
        %v798 = vadd.f32 %v627, %v797
        %799 = vdwg.mxu0
        %v800 = vadd.f32 %v798, %v755
        %v801 = vmul.f32 %v800, 0.5
        %v802 = vmul.f32 %v800, 0.70710677
        %v803 = vmul.f32 %v802, %v802
        %v804 = vmin.f32 16.0, %v803
        %v805 = vmul.f32 %v804, 2.1237322e-06
        %v806 = vadd.f32 %v805, 0.00028619796
        %v807 = vmul.f32 %v804, %v806
        %v808 = vadd.f32 %v807, 0.0036580483
        %v809 = vmul.f32 %v804, %v808
        %v810 = vadd.f32 %v809, 0.05243302
        %v811 = vmul.f32 %v804, %v810
        %v812 = vadd.f32 %v811, 0.18741608
        %v813 = vmul.f32 %v804, %v812
        %v814 = vadd.f32 %v813, 1.1283791
        %v815 = vmul.f32 %v802, %v814
        %v816 = vmul.f32 %v804, 3.8918573e-05
        %v817 = vadd.f32 %v816, 0.001143296
        %v818 = vmul.f32 %v804, %v817
        %v819 = vadd.f32 %v818, 0.014752088
        %v820 = vmul.f32 %v804, %v819
        %v821 = vadd.f32 %v820, 0.112945676
        %v822 = vmul.f32 %v804, %v821
        %v823 = vadd.f32 %v822, 0.4994258
        %v824 = vmul.f32 %v804, %v823
        %v825 = vadd.f32 %v824, 1.0
        %v826 = vrcp.pop %v825
        %v827 = vmul.f32 %v825, %v826
        %v828 = vsub.f32 1.0, %v827
        %v829 = vmul.f32 %v826, %v828
        %v830 = vadd.f32 %v826, %v829
        %vm831 = vweird.f32 %v825
        %vm832 = vweird.f32 %v826
        %vm833 = vmor %vm831, %vm832
        %v834 = vsel %vm833, %v826, %v830
        %v835 = vand.u32 2147483647, %v825
        %vm836 = vcmp.eq.f32.partialorder %v835, 8.507059e+37
        %v837 = vand.u32 %v825, 2147483648
        %v838 = vor.u32 1.1754944e-38, %v837
        %v839 = vsel %vm836, %v838, %v834
        %v840 = vmul.f32 %v815, %v839
        %v841 = vmin.f32 %v840, 1.0
        %v842 = vmax.f32 %v841, -1.0
        %v843 = vadd.f32 %v842, 1.0
        %v844 = vmul.f32 %v801, %v843
        %845 = vst [vmem:[#allocation2 + $0x8] sm:$0xff] %v844
        %v846 = vld [vmem:[#allocation2] sm:$0xff]
        %v847 = vld [vmem:[#allocation2 + $0x8] sm:$0xff]
        %848 = vadd.xlane.f32.xlu0 %v846
        %v849 = vpop.xlane.xlu0 %848
        %850 = vadd.xlane.f32.xlu0 %v847
        %v851 = vpop.xlane.xlu0 %850
        %v852 = vmul.f32 %v846, %v846
        %v853 = vmul.f32 %v847, %v847
        %854 = vadd.xlane.f32.xlu0 %v852
        %v855 = vpop.xlane.xlu0 %854
        %856 = vadd.xlane.f32.xlu0 %v853
        %v857 = vpop.xlane.xlu0 %856
        %v858 = vmul.f32 %v849, %v659
        %v859 = vmul.f32 %v851, %v659
        %v860 = vmul.f32 %v855, %v659
        %v861 = vmul.f32 %v857, %v659
        %v862 = vmul.f32 %v858, %v858
        %v863 = vmul.f32 %v859, %v859
        %v864 = vsub.f32 %v860, %v862
        %v865 = vsub.f32 %v861, %v863
        %v866 = vsub.f32 %v846, %v858
        %v867 = vsub.f32 %v847, %v859
        %v868 = vadd.f32 %v864, 1e-05
        %v869 = vadd.f32 %v865, 1e-05
        %v870 = vrsqrt.pop %v868
        %v871 = vmul.f32 %v870, %v868
        %v872 = vmul.f32 %v871, %v870
        %v873 = vmul.f32 0.5, %v872
        %v874 = vsub.f32 1.5, %v873
        %v875 = vmul.f32 %v870, %v874
        %vm876 = vweird.f32 %v868
        %vm877 = vweird.f32 %v870
        %vm878 = vmor %vm876, %vm877
        %v879 = vsel %vm878, %v870, %v875
        %v880 = vrsqrt.pop %v869
        %v881 = vmul.f32 %v880, %v869
        %v882 = vmul.f32 %v881, %v880
        %v883 = vmul.f32 0.5, %v882
        %v884 = vsub.f32 1.5, %v883
        %v885 = vmul.f32 %v880, %v884
        %vm886 = vweird.f32 %v869
        %vm887 = vweird.f32 %v880
        %vm888 = vmor %vm886, %vm887
        %v889 = vsel %vm888, %v880, %v885
        %v890 = vmul.f32 %v866, %v879
        %v891 = vmul.f32 %v867, %v889
        %v893 = vperm.slane %v628, 0
        %v895 = vmul.f32 %v890, %v893
        %v896 = vmul.f32 %v891, %v893
        %v898 = vperm.slane %v629, 0
        %v900 = vadd.f32 %v895, %v898
        %v901 = vadd.f32 %v896, %v898
        %v903 = vperm.slane %v646, 0
        %905 = vmatpush.msra.mxu0 %v645
        %906 = vmatpush.msra.mxu0 %v644
        %907 = vmatpush.msra.mxu0 %v643
        %908 = vmatpush.msra.mxu0 %v642
        %909 = vmatpush.msra.mxu0 %v641
        %910 = vmatpush.msra.mxu0 %v640
        %911 = vmatpush.msra.mxu0 %v639
        %912 = vmatpush.msra.mxu0 %v638
        %913 = vmatpush.msra.mxu0 %v637
        %914 = vmatpush.msra.mxu0 %v636
        %915 = vmatpush.msra.mxu0 %v635
        %916 = vmatpush.msra.mxu0 %v634
        %917 = vmatpush.msra.mxu0 %v633
        %918 = vmatpush.msra.mxu0 %v632
        %919 = vmatpush.msra.mxu0 %v631
        %920 = vmatpush.msra.mxu0 %v630
        %921 = vmatmul.f32.gmra.mxu0 %v900
        %v922 = vpop.f32.mrf.mxu0
        %v923 = vadd.f32 %v903, %v922
        %924 = vmatmul.f32.gmra.mxu0 %v901
        %v925 = vpop.f32.mrf.mxu0
        %v926 = vadd.f32 %v903, %v925
        %927 = vdwg.mxu0
        %v928 = vadd.f32 %v923, %v846
        %v929 = vadd.f32 %v926, %v847
        %v930 = vmul.f32 %v928, 0.5
        %v931 = vmul.f32 %v929, 0.5
        %v932 = vmul.f32 %v928, 0.70710677
        %v933 = vmul.f32 %v929, 0.70710677
        %v934 = vmul.f32 %v932, %v932
        %v935 = vmin.f32 16.0, %v934
        %v936 = vmul.f32 %v935, 2.1237322e-06
        %v937 = vadd.f32 %v936, 0.00028619796
        %v938 = vmul.f32 %v935, %v937
        %v939 = vadd.f32 %v938, 0.0036580483
        %v940 = vmul.f32 %v935, %v939
        %v941 = vadd.f32 %v940, 0.05243302
        %v942 = vmul.f32 %v935, %v941
        %v943 = vadd.f32 %v942, 0.18741608
        %v944 = vmul.f32 %v935, %v943
        %v945 = vadd.f32 %v944, 1.1283791
        %v946 = vmul.f32 %v932, %v945
        %v947 = vmul.f32 %v935, 3.8918573e-05
        %v948 = vadd.f32 %v947, 0.001143296
        %v949 = vmul.f32 %v935, %v948
        %v950 = vadd.f32 %v949, 0.014752088
        %v951 = vmul.f32 %v935, %v950
        %v952 = vadd.f32 %v951, 0.112945676
        %v953 = vmul.f32 %v935, %v952
        %v954 = vadd.f32 %v953, 0.4994258
        %v955 = vmul.f32 %v935, %v954
        %v956 = vadd.f32 %v955, 1.0
        %v957 = vrcp.pop %v956
        %v958 = vmul.f32 %v956, %v957
        %v959 = vsub.f32 1.0, %v958
        %v960 = vmul.f32 %v957, %v959
        %v961 = vadd.f32 %v957, %v960
        %vm962 = vweird.f32 %v956
        %vm963 = vweird.f32 %v957
        %vm964 = vmor %vm962, %vm963
        %v965 = vsel %vm964, %v957, %v961
        %v966 = vand.u32 2147483647, %v956
        %vm967 = vcmp.eq.f32.partialorder %v966, 8.507059e+37
        %v968 = vand.u32 %v956, 2147483648
        %v969 = vor.u32 1.1754944e-38, %v968
        %v970 = vsel %vm967, %v969, %v965
        %v971 = vmul.f32 %v946, %v970
        %v972 = vmin.f32 %v971, 1.0
        %v973 = vmax.f32 %v972, -1.0
        %v974 = vmul.f32 %v933, %v933
        %v975 = vmin.f32 16.0, %v974
        %v976 = vmul.f32 %v975, 2.1237322e-06
        %v977 = vadd.f32 %v976, 0.00028619796
        %v978 = vmul.f32 %v975, %v977
        %v979 = vadd.f32 %v978, 0.0036580483
        %v980 = vmul.f32 %v975, %v979
        %v981 = vadd.f32 %v980, 0.05243302
        %v982 = vmul.f32 %v975, %v981
        %v983 = vadd.f32 %v982, 0.18741608
        %v984 = vmul.f32 %v975, %v983
        %v985 = vadd.f32 %v984, 1.1283791
        %v986 = vmul.f32 %v933, %v985
        %v987 = vmul.f32 %v975, 3.8918573e-05
        %v988 = vadd.f32 %v987, 0.001143296
        %v989 = vmul.f32 %v975, %v988
        %v990 = vadd.f32 %v989, 0.014752088
        %v991 = vmul.f32 %v975, %v990
        %v992 = vadd.f32 %v991, 0.112945676
        %v993 = vmul.f32 %v975, %v992
        %v994 = vadd.f32 %v993, 0.4994258
        %v995 = vmul.f32 %v975, %v994
        %v996 = vadd.f32 %v995, 1.0
        %v997 = vrcp.pop %v996
        %v998 = vmul.f32 %v996, %v997
        %v999 = vsub.f32 1.0, %v998
        %v1000 = vmul.f32 %v997, %v999
        %v1001 = vadd.f32 %v997, %v1000
        %vm1002 = vweird.f32 %v996
        %vm1003 = vweird.f32 %v997
        %vm1004 = vmor %vm1002, %vm1003
        %v1005 = vsel %vm1004, %v997, %v1001
        %v1006 = vand.u32 2147483647, %v996
        %vm1007 = vcmp.eq.f32.partialorder %v1006, 8.507059e+37
        %v1008 = vand.u32 %v996, 2147483648
        %v1009 = vor.u32 1.1754944e-38, %v1008
        %v1010 = vsel %vm1007, %v1009, %v1005
        %v1011 = vmul.f32 %v986, %v1010
        %v1012 = vmin.f32 %v1011, 1.0
        %v1013 = vmax.f32 %v1012, -1.0
        %v1014 = vadd.f32 %v973, 1.0
        %v1015 = vadd.f32 %v1013, 1.0
        %v1016 = vmul.f32 %v930, %v1014
        %v1017 = vmul.f32 %v931, %v1015
        %1018 = vst [vmem:[#allocation2] sm:$0xff] %v1016
        %1019 = vst [vmem:[#allocation2 + $0x8] sm:$0xff] %v1017
        %p1020 = scmp.eq.s32.totalorder %s29, 2
        // Predicated region
        $region85: #{fire_svd_forward.1} parent=75 // pred_check
          %p1021 = pneg %p1020
        $region86: #{fire_svd_forward.1} parent=75 // pred_check_branch
          %1023 = sbr.rel (%p1021) target = $region88
        $region87: #{fire_svd_forward.1} parent=75 // pred_region
          %v1024 = vld [vmem:[%s11] sm:$0x3]
          %vm1025 = vcmask 130048
          %v1027 = vsel %vm1025, %v1024, 0
          %1029 = vmatpush.msra.mxu0 0.0
          %1030 = vmatpush.msra.mxu0 0.0
          %1031 = vmatpush.msra.mxu0 0.0
          %1032 = vmatpush.msra.mxu0 0.0
          %1033 = vmatpush.msra.mxu0 0.0
          %1034 = vmatpush.msra.mxu0 0.0
          %1035 = vmatpush.msra.mxu0 0.0
          %1036 = vmatpush.msra.mxu0 0.0
          %1037 = vmatpush.msra.mxu0 0.0
          %1038 = vmatpush.msra.mxu0 0.0
          %1039 = vmatpush.msra.mxu0 0.0
          %1040 = vmatpush.msra.mxu0 0.0
          %1041 = vmatpush.msra.mxu0 0.0
          %1042 = vmatpush.msra.mxu0 0.0
          %1043 = vmatpush.msra.mxu0 %v1017
          %1044 = vmatpush.msra.mxu0 %v1016
          %1045 = vmatmul.f32.gmra.mxu0 %v1027
          %v1046 = vpop.f32.mrf.mxu0
          %v1047 = vadd.f32 0.0, %v1046
          %1048 = vdwg.mxu0
          %v1049 = vld [vmem:[%s12] sm:$0xff]
          %v1050 = vld [vmem:[%s12 + $0x8] sm:$0xff]
          %v1051 = vld [vmem:[%s12 + $0x10] sm:$0xff]
          %v1052 = vld [vmem:[%s12 + $0x18] sm:$0xff]
          %v1053 = vld [vmem:[%s12 + $0x20] sm:$0xff]
          %v1054 = vld [vmem:[%s12 + $0x28] sm:$0xff]
          %v1055 = vld [vmem:[%s12 + $0x30] sm:$0xff]
          %v1056 = vld [vmem:[%s12 + $0x38] sm:$0xff]
          %v1057 = vld [vmem:[%s12 + $0x40] sm:$0xff]
          %v1058 = vld [vmem:[%s12 + $0x48] sm:$0xff]
          %v1059 = vld [vmem:[%s12 + $0x50] sm:$0xff]
          %v1060 = vld [vmem:[%s12 + $0x58] sm:$0xff]
          %v1061 = vld [vmem:[%s12 + $0x60] sm:$0xff]
          %v1062 = vld [vmem:[%s12 + $0x68] sm:$0xff]
          %v1063 = vld [vmem:[%s12 + $0x70] sm:$0xff]
          %v1064 = vld [vmem:[%s12 + $0x78] sm:$0xff]
          %v1065 = vld [vmem:[%s13] sm:$0x1]
          %v1067 = vperm.slane %v1065, 0
          %1069 = vmatpush.msra.mxu0 %v1064
          %1070 = vmatpush.msra.mxu0 %v1063
          %1071 = vmatpush.msra.mxu0 %v1062
          %1072 = vmatpush.msra.mxu0 %v1061
          %1073 = vmatpush.msra.mxu0 %v1060
          %1074 = vmatpush.msra.mxu0 %v1059
          %1075 = vmatpush.msra.mxu0 %v1058
          %1076 = vmatpush.msra.mxu0 %v1057
          %1077 = vmatpush.msra.mxu0 %v1056
          %1078 = vmatpush.msra.mxu0 %v1055
          %1079 = vmatpush.msra.mxu0 %v1054
          %1080 = vmatpush.msra.mxu0 %v1053
          %1081 = vmatpush.msra.mxu0 %v1052
          %1082 = vmatpush.msra.mxu0 %v1051
          %1083 = vmatpush.msra.mxu0 %v1050
          %1084 = vmatpush.msra.mxu0 %v1049
          %1085 = vmatmul.f32.gmra.mxu0 %v1047
          %v1086 = vpop.f32.mrf.mxu0
          %v1087 = vadd.f32 %v1067, %v1086
          %1088 = vdwg.mxu0
          %vm1089 = vcmask 74752
          %1090 = vst.msk [vmem:[#allocation6] sm:$0x3] %vm1089, %v1087
        $region88: #{fire_svd_forward.1} parent=75 // pred_fallthru
          _
        // Predicated region
        $region89: #{fire_svd_forward.1} parent=75 // pred_check
          %p1091 = pneg %p376
        $region90: #{fire_svd_forward.1} parent=75 // pred_check_branch
          %1093 = sbr.rel (%p1091) target = $region92
        $region91: #{fire_svd_forward.1} parent=75 // pred_region
          %1095 = vsyncadd [#allocation5], 0
          %s1097 = sshll.u32 [#allocation6], 4
          %s1098 = int_to_ptr.vmem [resolvable:$true] %s1097
          %s1099 = sshll.u32 %s14, 4
          %s1100 = int_to_ptr.hbm [resolvable:$true] %s1099
          %1102 = dma.vmem_to_hbm [thread:$0]  %s1098, 32, %s1100, [#allocation5]
        $region92: #{fire_svd_forward.1} parent=75 // pred_fallthru
          _
        // Predicated region
        $region93: #{fire_svd_forward.1} parent=75 // pred_check
          %p1103 = pneg %p376
        $region94: #{fire_svd_forward.1} parent=75 // pred_check_branch
          %1105 = sbr.rel (%p1103) target = $region96
        $region95: #{fire_svd_forward.1} parent=75 // pred_region
          %1107 = dma.done [#allocation5], 32
        $region96: #{fire_svd_forward.1} parent=75 // pred_fallthru
          _
      $region76: #{fire_svd_forward.1} parent=5 // pred_fallthru
        _
      %p1108 = scmp.le.s32.totalorder 2, %s24
      // Predicated region
      $region97: #{fire_svd_forward.1} parent=5 // pred_check
        %p1109 = pneg %p1108
      $region98: #{fire_svd_forward.1} parent=5 // pred_check_branch
        %1111 = sbr.rel (%p1109) target = $region100
      $region99: #{fire_svd_forward.1} parent=5 // pred_region
        %s1112 = ssub.s32 %s24, 2
      $region100: #{fire_svd_forward.1} parent=5 // pred_fallthru
        _
    $region6: #{fire_svd_forward.1} parent=1 // loop_footer
      %s28 = sadd.s32 1, %s24
    $region7: #{fire_svd_forward.1} parent=1 // loop_footer_branch
      %23 = sbr.rel target = $region3
    $region8: #{fire_svd_forward.1} parent=1 // loop_exit
      _
    %1113 = vsyncpa [#allocation4], 1
    %s1114 = scalar_lea.sflag [#allocation4], 1
    %1115 = vsyncpa %s1114, 1
    %1116 = vsyncpa [#allocation5], 1
    %s1117 = scalar_lea.sflag [#allocation5], 1
    %1118 = vsyncpa %s1117, 1

</llo_original>
